<compile_context>
chip_gen: v7x
topology: tpu7x:2x2x1
jax: 0.10.0
libtpu: 0.0.40
codegen_flags: <defaults>
</compile_context>

<pallas_src>
import functools

import numpy as np
import jax
import jax.numpy as jnp
from jax.experimental import pallas as pl
from jax.experimental.pallas import tpu as pltpu


def _round_up(v, m):
    return (v + m - 1) // m * m


# ----------------------------------------------------------------------------
# Pallas kernels (lane-dense transposed layout: out[N, M_tile])
# ----------------------------------------------------------------------------
def _mmT_kernel(w_ref, b_ref, a_ref, o_ref, *, act):
    """o (N, TM) = act(W (N, K) @ A (K, TM) + b (N, 1))."""
    acc = jnp.dot(w_ref[...], a_ref[...], preferred_element_type=jnp.float32)
    acc = acc + b_ref[...]
    if act == "relu":
        acc = jnp.maximum(acc, 0.0)
    o_ref[...] = acc.astype(o_ref.dtype)


def _mmT_chain_kernel(w1_ref, b1_ref, w2_ref, b2_ref, a_ref, e_ref, o_ref, *,
                      combine):
    """h = relu(W1 @ A + b1); y = W2 @ h + b2; o = y + e  or  o = e * y."""
    h = jnp.dot(w1_ref[...], a_ref[...], preferred_element_type=jnp.float32)
    h = jnp.maximum(h + b1_ref[...], 0.0)
    y = jnp.dot(w2_ref[...], h, preferred_element_type=jnp.float32) + b2_ref[...]
    if combine == "add":
        o_ref[...] = y + e_ref[...]
    else:  # "mul": y is (1, TM), broadcast over e's channel rows
        o_ref[...] = e_ref[...] * y


def _map_dict_kernel(w1_ref, b1_ref, w2_ref, b2_ref, dlrn_ref, dhrT_ref,
                     x_ref, x1m_ref, x2_ref):
    """Mapping MLP + cosine-similarity + keep-max mask + HR-dict lookup.

    Columns are samples (lane axis), rows are features.
      x (kk, TM) -> x1m (kk, TM), x2 (skk, TM)
    dlrn is the LR dictionary with rows pre-normalized by max(||row||, eps).
    """
    h = jnp.dot(w1_ref[...], x_ref[...], preferred_element_type=jnp.float32)
    h = jnp.maximum(h + b1_ref[...], 0.0)
    x1m = jnp.dot(w2_ref[...], h, preferred_element_type=jnp.float32) + b2_ref[...]
    x1m_ref[...] = x1m
    dots = jnp.dot(dlrn_ref[...], x1m, preferred_element_type=jnp.float32)  # (nc, TM)
    xn = jnp.sqrt(jnp.sum(x1m * x1m, axis=0, keepdims=True))                # (1, TM)
    inv = pl.reciprocal(jnp.maximum(xn, 1e-8), approx=True)
    sim = dots * inv
    mx = jnp.max(sim, axis=0, keepdims=True)
    # Reference (PyTorch) keeps ALL columns tied at the max and keeps the value.
    sim = jnp.where(sim < mx, 0.0, sim)
    x2_ref[...] = jnp.dot(dhrT_ref[...], sim, preferred_element_type=jnp.float32)


# ----------------------------------------------------------------------------
# Pallas wrappers
# ----------------------------------------------------------------------------
def pallas_mmT(w, b, aT, act=None, tm=512):
    """w: (N, K), b: (N,), aT: (K, M) -> (N, M) float32, bf16 MXU operands."""
    N, K = w.shape
    M = aT.shape[1]
    tm_eff = min(tm, _round_up(M, 128))
    Mp = _round_up(M, tm_eff)
    a_p = jnp.pad(aT, ((0, 0), (0, Mp - M))).astype(jnp.bfloat16)
    out = pl.pallas_call(
        functools.partial(_mmT_kernel, act=act),
        out_shape=jax.ShapeDtypeStruct((N, Mp), jnp.float32),
        grid=(Mp // tm_eff,),
        in_specs=[
            pl.BlockSpec((N, K), lambda i: (0, 0)),
            pl.BlockSpec((N, 1), lambda i: (0, 0)),
            pl.BlockSpec((K, tm_eff), lambda i: (0, i)),
        ],
        out_specs=pl.BlockSpec((N, tm_eff), lambda i: (0, i)),
        compiler_params=pltpu.CompilerParams(dimension_semantics=("parallel",)),
    )(w.astype(jnp.bfloat16), b.reshape(N, 1).astype(jnp.float32), a_p)
    return out[:, :M]


def pallas_mmT_chain(w1, b1, w2, b2, aT, eT, combine, tm=512):
    """Fused: relu(W1@A + b1) -> W2@(.) + b2 -> combine with eT ('add'/'mul')."""
    N1, K = w1.shape
    N2 = w2.shape[0]
    NE, M = eT.shape
    NO = N2 if combine == "add" else NE
    tm_eff = min(tm, _round_up(M, 128))
    Mp = _round_up(M, tm_eff)
    a_p = jnp.pad(aT, ((0, 0), (0, Mp - M))).astype(jnp.bfloat16)
    e_p = jnp.pad(eT.astype(jnp.float32), ((0, 0), (0, Mp - M)))
    out = pl.pallas_call(
        functools.partial(_mmT_chain_kernel, combine=combine),
        out_shape=jax.ShapeDtypeStruct((NO, Mp), jnp.float32),
        grid=(Mp // tm_eff,),
        in_specs=[
            pl.BlockSpec((N1, K), lambda i: (0, 0)),
            pl.BlockSpec((N1, 1), lambda i: (0, 0)),
            pl.BlockSpec((N2, N1), lambda i: (0, 0)),
            pl.BlockSpec((N2, 1), lambda i: (0, 0)),
            pl.BlockSpec((K, tm_eff), lambda i: (0, i)),
            pl.BlockSpec((NE, tm_eff), lambda i: (0, i)),
        ],
        out_specs=pl.BlockSpec((NO, tm_eff), lambda i: (0, i)),
        compiler_params=pltpu.CompilerParams(dimension_semantics=("parallel",)),
    )(w1.astype(jnp.bfloat16), b1.reshape(N1, 1).astype(jnp.float32),
      w2.astype(jnp.float32), b2.reshape(N2, 1).astype(jnp.float32),
      a_p, e_p)
    return out[:, :M]


def pallas_map_dict(xT, w1, b1, w2, b2, d_lr, d_hr, tm=512):
    """xT: (kk, M) -> (x1mT (kk, M), x2T (skk, M)).  Fused MLP + dict lookup."""
    kk, M = xT.shape
    hdim = w1.shape[0]
    nc, skk = d_hr.shape
    tm_eff = min(tm, _round_up(M, 128))
    Mp = _round_up(M, tm_eff)
    x_p = jnp.pad(xT.astype(jnp.float32), ((0, 0), (0, Mp - M)))
    # Hoist LR-dictionary norms out of the kernel (grid-invariant);
    # per-norm clamp matches torch.cosine_similarity's eps handling.
    dn = jnp.sqrt(jnp.sum(d_lr * d_lr, axis=1, keepdims=True))
    d_lrn = (d_lr / jnp.maximum(dn, 1e-8)).astype(jnp.float32)
    outs = pl.pallas_call(
        _map_dict_kernel,
        out_shape=(jax.ShapeDtypeStruct((kk, Mp), jnp.float32),
                   jax.ShapeDtypeStruct((skk, Mp), jnp.float32)),
        grid=(Mp // tm_eff,),
        in_specs=[
            pl.BlockSpec((hdim, kk), lambda i: (0, 0)),
            pl.BlockSpec((hdim, 1), lambda i: (0, 0)),
            pl.BlockSpec((kk, hdim), lambda i: (0, 0)),
            pl.BlockSpec((kk, 1), lambda i: (0, 0)),
            pl.BlockSpec((nc, kk), lambda i: (0, 0)),
            pl.BlockSpec((skk, nc), lambda i: (0, 0)),
            pl.BlockSpec((kk, tm_eff), lambda i: (0, i)),
        ],
        out_specs=(pl.BlockSpec((kk, tm_eff), lambda i: (0, i)),
                   pl.BlockSpec((skk, tm_eff), lambda i: (0, i))),
        compiler_params=pltpu.CompilerParams(dimension_semantics=("parallel",)),
    )(w1.astype(jnp.float32), b1.reshape(hdim, 1).astype(jnp.float32),
      w2.astype(jnp.float32), b2.reshape(kk, 1).astype(jnp.float32),
      d_lrn, d_hr.T.astype(jnp.float32), x_p)
    return outs[0][:, :M], outs[1][:, :M]


# ----------------------------------------------------------------------------
# JAX glue: transposed im2col, conv wrappers, unfold/fold, bicubic resize
# ----------------------------------------------------------------------------
def _im2col_T(x, kh, kw, stride, dilation, pad):
    """Returns columns in transposed layout: (C*kh*kw, B*Ho*Wo)."""
    B, C, H, W = x.shape
    xp = jnp.pad(x, ((0, 0), (0, 0), (pad, pad), (pad, pad)))
    Ho = (H + 2 * pad - dilation * (kh - 1) - 1) // stride + 1
    Wo = (W + 2 * pad - dilation * (kw - 1) - 1) // stride + 1
    slices = []
    for i in range(kh):
        for j in range(kw):
            slices.append(
                xp[:, :,
                   i * dilation: i * dilation + (Ho - 1) * stride + 1: stride,
                   j * dilation: j * dilation + (Wo - 1) * stride + 1: stride])
    cols = jnp.stack(slices, axis=0)               # (kh*kw, B, C, Ho, Wo)
    cols = cols.transpose(2, 0, 1, 3, 4)           # (C, kh*kw, B, Ho, Wo)
    return cols.reshape(C * kh * kw, B * Ho * Wo), Ho, Wo


def convT_2d(x, w, b, stride=1, dilation=1, padding=None, act=None, tm=512):
    """x: (B, C, H, W), w: (O, C, kh, kw) -> (B, O, Ho, Wo)."""
    O, C, kh, kw = w.shape
    if padding is None:
        padding = kh // 2
    B = x.shape[0]
    colsT, Ho, Wo = _im2col_T(x, kh, kw, stride, dilation, padding)
    outT = pallas_mmT(w.reshape(O, C * kh * kw), b, colsT, act=act, tm=tm)
    return outT.reshape(O, B, Ho, Wo).transpose(1, 0, 2, 3)


def conv_transpose2d_s1(x, w, b, dilation, padding, act=None):
    """stride-1 ConvTranspose2d == conv with flipped/transposed weight."""
    k = w.shape[2]
    wf = jnp.flip(w, axis=(2, 3)).transpose(1, 0, 2, 3)   # (out, in, kh, kw)
    eff_pad = dilation * (k - 1) - padding
    return convT_2d(x, wf, b, dilation=dilation, padding=eff_pad, act=act)


def unfold_nonoverlap(x, k):
    B, C, H, W = x.shape
    Hb, Wb = H // k, W // k
    x = x.reshape(B, C, Hb, k, Wb, k).transpose(0, 1, 3, 5, 2, 4)
    return x.reshape(B, C * k * k, Hb * Wb)


def fold_nonoverlap(cols, k, H, W, C):
    B = cols.shape[0]
    Hb, Wb = H // k, W // k
    x = cols.reshape(B, C, k, k, Hb, Wb).transpose(0, 1, 4, 2, 5, 3)
    return x.reshape(B, C, H, W)


def _bicubic_matrix(in_size, out_size, a=-0.75):
    """PyTorch bicubic (align_corners=False, antialias=False) as a matrix."""
    def w(x):
        x = abs(x)
        if x <= 1.0:
            return (a + 2) * x ** 3 - (a + 3) * x ** 2 + 1
        if x < 2.0:
            return a * x ** 3 - 5 * a * x ** 2 + 8 * a * x - 4 * a
        return 0.0

    M = np.zeros((out_size, in_size), dtype=np.float32)
    scale = in_size / out_size
    for oi in range(out_size):
        src = (oi + 0.5) * scale - 0.5
        fl = int(np.floor(src))
        t = src - fl
        for m in range(-1, 3):
            idx = min(max(fl + m, 0), in_size - 1)
            M[oi, idx] += w(m - t)
    return jnp.asarray(M)


def bicubic_resize(x, out_h, out_w):
    B, C, H, W = x.shape
    Mh = _bicubic_matrix(H, out_h)
    Mw = _bicubic_matrix(W, out_w)
    return jnp.einsum("oh,bchw,pw->bcop", Mh, x, Mw)


# ----------------------------------------------------------------------------
# Modules
# ----------------------------------------------------------------------------
def _pad3to5(w3):
    return jnp.pad(w3, ((0, 0), (0, 0), (1, 1), (1, 1)))


def msrb_forward(x, p):
    B, n, H, W = x.shape
    # Stage 1: fused [conv3x3_1 | conv5x5_1] + ReLU  (one matmul, N=2n lanes-dense out)
    w_a = jnp.concatenate([_pad3to5(p["c31_w"]), p["c51_w"]], axis=0)   # (2n, n, 5, 5)
    b_a = jnp.concatenate([p["c31_b"], p["c51_b"]], axis=0)
    x1 = convT_2d(x, w_a, b_a, padding=2, act="relu")                   # (B, 2n, H, W)
    # Stage 2: fused [conv3x3_2 | conv5x5_2]+ReLU -> conv1x1 -> +x, single kernel
    w_b = jnp.concatenate([_pad3to5(p["c32_w"]), p["c52_w"]], axis=0)   # (2n, 2n, 5, 5)
    b_b = jnp.concatenate([p["c32_b"], p["c52_b"]], axis=0)
    colsT, _, _ = _im2col_T(x1, 5, 5, 1, 1, 2)
    xT = x.transpose(1, 0, 2, 3).reshape(n, B * H * W)                  # residual
    outT = pallas_mmT_chain(w_b.reshape(2 * n, 2 * n * 25), b_b,
                            p["c11_w"].reshape(n, 2 * n), p["c11_b"],
                            colsT, xT, combine="add")
    return outT.reshape(n, B, H, W).transpose(1, 0, 2, 3)


def dictionary_forward(x, p, k, n_class, scale):
    B, n, H, W = x.shape
    sk = scale * k
    kk = k * k
    lar = n * kk
    # body: 3x MSRB
    x1 = x
    for mp in p["msrb"]:
        x1 = msrb_forward(x1, mp)
    # unfold (non-overlapping) and lay rows out as lanes for the fused kernel
    cols = unfold_nonoverlap(x1, k)                        # (B, n*k*k, L)
    L = cols.shape[-1]
    x1u = cols.transpose(0, 2, 1).reshape(B, L, n, kk)     # (B, L, n, kk)
    xT = x1u.transpose(3, 0, 1, 2).reshape(kk, B * L * n)  # (kk, M)
    # LR dictionary via bicubic downsample of the HR dictionary
    d_hr = p["dictionary"]                                 # (n_class, sk*sk)
    d_lr = bicubic_resize(d_hr.reshape(1, n_class, sk, sk), k, k).reshape(n_class, kk)
    # fused mapping MLP + cosine sim + max-mask + HR lookup (one Pallas kernel)
    x1mT, x2T = pallas_map_dict(xT, p["map_w1"], p["map_b1"],
                                p["map_w2"], p["map_b2"], d_lr, d_hr)
    x1m = x1mT.reshape(kk, B, L, n).transpose(1, 2, 3, 0)          # (B, L, n, kk)
    x2 = x2T.reshape(sk * sk, B, L, n).transpose(1, 2, 3, 0)       # (B, L, n, skk)
    # fold back to images
    x1_img = fold_nonoverlap(x1m.reshape(B, L, lar).transpose(0, 2, 1), k, H, W, n)
    x2_img = fold_nonoverlap(
        x2.reshape(B, L, lar * scale * scale).transpose(0, 2, 1),
        sk, scale * H, scale * W, n)
    x1_up = bicubic_resize(x1_img, scale * H, scale * W)
    x3 = jnp.concatenate([x1_up, x2_img], axis=1)
    x3 = convT_2d(x3, p["c11_w"], p["c11_b"], padding=0)
    # encoder (dilated convs)
    e = x3
    for (w, b), dil in zip(p["enc"], (1, 2, 4)):
        e = convT_2d(e, w, b, dilation=dil, padding=dil, act="relu")
    # decoder (first two stride-1 transposed convs)
    d = e
    for (w, b), dil in zip(p["dec"][:2], (4, 2)):
        d = conv_transpose2d_s1(d, w, b, dilation=dil, padding=dil, act="relu")
    # last decoder conv + ReLU + 1x1 gate + attn*x3, fused into one kernel
    w_last, b_last = p["dec"][2]
    wf = jnp.flip(w_last, axis=(2, 3)).transpose(1, 0, 2, 3)       # (n, n, 3, 3)
    colsT, Ho, Wo = _im2col_T(d, 3, 3, 1, 1, 1)                    # eff pad = 2 - 1 = 1
    x3T = x3.transpose(1, 0, 2, 3).reshape(n, B * Ho * Wo)
    x3T = pallas_mmT_chain(wf.reshape(n, n * 9), b_last,
                           p["gate_w"].reshape(1, n), p["gate_b"],
                           colsT, x3T, combine="mul")
    x3 = x3T.reshape(n, B, Ho, Wo).transpose(1, 0, 2, 3)
    x3 = convT_2d(x3, p["c33_w"], p["c33_b"], stride=scale, padding=1)
    return x3


def mrfb_forward(x, params, kernel_size, n_class, scale):
    n = x.shape[1] // 2
    or_x, tx_x = x[:, :n], x[:, n:]
    or_x = dictionary_forward(or_x, params["or"], kernel_size, n_class, scale)
    tx_x = dictionary_forward(tx_x, params["tx"], kernel_size, n_class, scale)
    fu = jnp.concatenate([or_x, tx_x], axis=1)
    fu = convT_2d(fu, params["fus1_w"], params["fus1_b"], act="relu")
    fu = convT_2d(fu, params["fus2_w"], params["fus2_b"], act="relu")
    or_res, tx_res = fu[:, :n], fu[:, n:]
    return jnp.concatenate([or_x + or_res, tx_x + tx_res], axis=1)


# ----------------------------------------------------------------------------
# Deterministic parameter construction
# ----------------------------------------------------------------------------
class ParamGen:
    def __init__(self, key):
        self._key = key
        self._i = 0

    def take(self, shape, scale=0.05):
        self._i += 1
        k = jax.random.fold_in(self._key, self._i)
        return scale * jax.random.normal(k, shape, dtype=jnp.float32)


def init_msrb(g, n):
    return {
        "c31_w": g.take((n, n, 3, 3)), "c31_b": g.take((n,)),
        "c51_w": g.take((n, n, 5, 5)), "c51_b": g.take((n,)),
        "c32_w": g.take((n, 2 * n, 3, 3)), "c32_b": g.take((n,)),
        "c52_w": g.take((n, 2 * n, 5, 5)), "c52_b": g.take((n,)),
        "c11_w": g.take((n, 2 * n, 1, 1)), "c11_b": g.take((n,)),
    }


def init_dictionary(g, n, k, n_class, scale):
    sk = scale * k
    return {
        "msrb": [init_msrb(g, n) for _ in range(3)],
        # PyTorch initializes the dictionary Parameter to zeros; use small
        # random values so the similarity/lookup path is actually exercised.
        "dictionary": g.take((n_class, sk * sk), scale=0.1),
        "map_w1": g.take((256, k * k)), "map_b1": g.take((256,)),
        "map_w2": g.take((k * k, 256)), "map_b2": g.take((k * k,)),
        "c11_w": g.take((n, 2 * n, 1, 1)), "c11_b": g.take((n,)),
        "enc": [(g.take((n, n, 3, 3)), g.take((n,))) for _ in range(3)],
        "dec": [(g.take((n, n, 3, 3)), g.take((n,))) for _ in range(3)],
        "gate_w": g.take((1, n, 1, 1)), "gate_b": g.take((1,)),
        "c33_w": g.take((n, n, 3, 3)), "c33_b": g.take((n,)),
    }


if __name__ == "__main__":
    # small but consistent sizes: H, W divisible by d_kernel_size
    B, n_feats, H, W = 2, 4, 8, 8
    d_kernel_size, n_class, scale = 4, 8, 2

    root = jax.random.PRNGKey(0)
    pkey, xkey = jax.random.split(root)
    g = ParamGen(pkey)
    params = {
        "or": init_dictionary(g, n_feats, d_kernel_size, n_class, scale),
        "tx": init_dictionary(g, n_feats, d_kernel_size, n_class, scale),
        "fus1_w": g.take((2 * n_feats, 2 * n_feats, 3, 3)),
        "fus1_b": g.take((2 * n_feats,)),
        "fus2_w": g.take((2 * n_feats, 2 * n_feats, 3, 3)),
        "fus2_b": g.take((2 * n_feats,)),
    }

    x = jax.random.normal(xkey, (B, 2 * n_feats, H, W), dtype=jnp.float32)

    fwd = jax.jit(functools.partial(
        mrfb_forward, kernel_size=d_kernel_size, n_class=n_class, scale=scale))
    out = fwd(x, params)
    jax.block_until_ready(out)
    assert out.shape == (B, 2 * n_feats, H, W), out.shape
    assert jnp.all(jnp.isfinite(out))
    print("KERNEL_OK")
</pallas_src>

<mosaic_0001>
module attributes {stable_mosaic.version = 11 : i64} {
  func.func @_mmT_kernel(%arg0: i32, %arg1: memref<8x100xbf16, #tpu.memory_space<vmem>>, %arg2: memref<8x1xf32, #tpu.memory_space<vmem>>, %arg3: memref<100x128xbf16, #tpu.memory_space<vmem>>, %arg4: memref<8x128xf32, #tpu.memory_space<vmem>>) attributes {dimension_semantics = [#tpu.dimension_semantics<parallel>], iteration_bounds = array<i64: 1>, scalar_prefetch = 0 : i64, scratch_operands = 0 : i64, tpu.core_type = #tpu.core_type<tc>, window_params = [{pipeline_mode = #tpu.pipeline_mode<synchronous>, transform_indices = @transform_0, window_bounds = array<i64: 8, 100>}, {pipeline_mode = #tpu.pipeline_mode<synchronous>, transform_indices = @transform_1, window_bounds = array<i64: 8, 1>}, {transform_indices = @transform_2, window_bounds = array<i64: 100, 128>}, {transform_indices = @transform_3, window_bounds = array<i64: 8, 128>}]} {
    %c0 = arith.constant 0 : index
    %c0_0 = arith.constant 0 : index
    %0 = vector.load %arg1[%c0, %c0_0] : memref<8x100xbf16, #tpu.memory_space<vmem>>, vector<8x100xbf16>
    %c0_1 = arith.constant 0 : index
    %c0_2 = arith.constant 0 : index
    %1 = vector.load %arg3[%c0_1, %c0_2] : memref<100x128xbf16, #tpu.memory_space<vmem>>, vector<100x128xbf16>
    %cst = arith.constant dense<0.000000e+00> : vector<8x128xf32>
    %2 = tpu.matmul %0, %1, %cst {dimension_numbers = #tpu.dot_dimension_numbers<[1], [0], [0], [1], [0, 0, 1, 1], [], []>} : vector<8x100xbf16>, vector<100x128xbf16>, vector<8x128xf32> -> vector<8x128xf32>
    %c0_3 = arith.constant 0 : index
    %c0_4 = arith.constant 0 : index
    %3 = vector.load %arg2[%c0_3, %c0_4] : memref<8x1xf32, #tpu.memory_space<vmem>>, vector<8x1xf32>
    %4 = vector.broadcast %3 : vector<8x1xf32> to vector<8x128xf32>
    %5 = arith.addf %2, %4 : vector<8x128xf32>
    %cst_5 = arith.constant 0.000000e+00 : f32
    %6 = vector.broadcast %cst_5 : f32 to vector<8x128xf32>
    %7 = arith.maximumf %5, %6 : vector<8x128xf32>
    %c0_6 = arith.constant 0 : index
    %c0_7 = arith.constant 0 : index
    %8 = vector.load %arg4[%c0_6, %c0_7] : memref<8x128xf32, #tpu.memory_space<vmem>>, vector<8x128xf32>
    tpu.vector_store %arg4[%c0_6, %c0_7], %7 {strides = array<i32>} : memref<8x128xf32, #tpu.memory_space<vmem>>, vector<8x128xf32>,
    return
  }
  func.func @transform_0(%arg0: i32) -> (i32, i32) {
    %c0_i32 = arith.constant 0 : i32
    %c0_i32_0 = arith.constant 0 : i32
    %c0_i32_1 = arith.constant 0 : i32
    return %c0_i32, %c0_i32_0 : i32, i32
  }
  func.func @transform_1(%arg0: i32) -> (i32, i32) {
    %c0_i32 = arith.constant 0 : i32
    %c0_i32_0 = arith.constant 0 : i32
    %c0_i32_1 = arith.constant 0 : i32
    return %c0_i32, %c0_i32_0 : i32, i32
  }
  func.func @transform_2(%arg0: i32) -> (i32, i32) {
    %c0_i32 = arith.constant 0 : i32
    %c0_i32_0 = arith.constant 0 : i32
    return %c0_i32, %arg0 : i32, i32
  }
  func.func @transform_3(%arg0: i32) -> (i32, i32) {
    %c0_i32 = arith.constant 0 : i32
    %c0_i32_0 = arith.constant 0 : i32
    return %c0_i32, %arg0 : i32, i32
  }
}

module attributes {stable_mosaic.version = 11 : i64} {
  func.func @_mmT_chain_kernel(%arg0: i32, %arg1: memref<8x200xbf16, #tpu.memory_space<vmem>>, %arg2: memref<8x1xf32, #tpu.memory_space<vmem>>, %arg3: memref<4x8xf32, #tpu.memory_space<vmem>>, %arg4: memref<4x1xf32, #tpu.memory_space<vmem>>, %arg5: memref<200x128xbf16, #tpu.memory_space<vmem>>, %arg6: memref<4x128xf32, #tpu.memory_space<vmem>>, %arg7: memref<4x128xf32, #tpu.memory_space<vmem>>) attributes {dimension_semantics = [#tpu.dimension_semantics<parallel>], iteration_bounds = array<i64: 1>, scalar_prefetch = 0 : i64, scratch_operands = 0 : i64, tpu.core_type = #tpu.core_type<tc>, window_params = [{pipeline_mode = #tpu.pipeline_mode<synchronous>, transform_indices = @transform_0, window_bounds = array<i64: 8, 200>}, {pipeline_mode = #tpu.pipeline_mode<synchronous>, transform_indices = @transform_1, window_bounds = array<i64: 8, 1>}, {pipeline_mode = #tpu.pipeline_mode<synchronous>, transform_indices = @transform_2, window_bounds = array<i64: 4, 8>}, {pipeline_mode = #tpu.pipeline_mode<synchronous>, transform_indices = @transform_3, window_bounds = array<i64: 4, 1>}, {transform_indices = @transform_4, window_bounds = array<i64: 200, 128>}, {transform_indices = @transform_5, window_bounds = array<i64: 4, 128>}, {transform_indices = @transform_6, window_bounds = array<i64: 4, 128>}]} {
    %c0 = arith.constant 0 : index
    %c0_0 = arith.constant 0 : index
    %0 = vector.load %arg1[%c0, %c0_0] : memref<8x200xbf16, #tpu.memory_space<vmem>>, vector<8x200xbf16>
    %c0_1 = arith.constant 0 : index
    %c0_2 = arith.constant 0 : index
    %1 = vector.load %arg5[%c0_1, %c0_2] : memref<200x128xbf16, #tpu.memory_space<vmem>>, vector<200x128xbf16>
    %cst = arith.constant dense<0.000000e+00> : vector<8x128xf32>
    %2 = tpu.matmul %0, %1, %cst {dimension_numbers = #tpu.dot_dimension_numbers<[1], [0], [0], [1], [0, 0, 1, 1], [], []>} : vector<8x200xbf16>, vector<200x128xbf16>, vector<8x128xf32> -> vector<8x128xf32>
    %c0_3 = arith.constant 0 : index
    %c0_4 = arith.constant 0 : index
    %3 = vector.load %arg2[%c0_3, %c0_4] : memref<8x1xf32, #tpu.memory_space<vmem>>, vector<8x1xf32>
    %4 = vector.broadcast %3 : vector<8x1xf32> to vector<8x128xf32>
    %5 = arith.addf %2, %4 : vector<8x128xf32>
    %cst_5 = arith.constant 0.000000e+00 : f32
    %6 = vector.broadcast %cst_5 : f32 to vector<8x128xf32>
    %7 = arith.maximumf %5, %6 : vector<8x128xf32>
    %c0_6 = arith.constant 0 : index
    %c0_7 = arith.constant 0 : index
    %8 = vector.load %arg3[%c0_6, %c0_7] : memref<4x8xf32, #tpu.memory_space<vmem>>, vector<4x8xf32>
    %cst_8 = arith.constant dense<0.000000e+00> : vector<4x128xf32>
    %9 = tpu.matmul %8, %7, %cst_8 {dimension_numbers = #tpu.dot_dimension_numbers<[1], [0], [0], [1], [0, 0, 1, 1], [], []>} : vector<4x8xf32>, vector<8x128xf32>, vector<4x128xf32> -> vector<4x128xf32>
    %c0_9 = arith.constant 0 : index
    %c0_10 = arith.constant 0 : index
    %10 = vector.load %arg4[%c0_9, %c0_10] : memref<4x1xf32, #tpu.memory_space<vmem>>, vector<4x1xf32>
    %11 = vector.broadcast %10 : vector<4x1xf32> to vector<4x128xf32>
    %12 = arith.addf %9, %11 : vector<4x128xf32>
    %c0_11 = arith.constant 0 : index
    %c0_12 = arith.constant 0 : index
    %13 = vector.load %arg6[%c0_11, %c0_12] : memref<4x128xf32, #tpu.memory_space<vmem>>, vector<4x128xf32>
    %14 = arith.addf %12, %13 : vector<4x128xf32>
    %c0_13 = arith.constant 0 : index
    %c0_14 = arith.constant 0 : index
    %15 = vector.load %arg7[%c0_13, %c0_14] : memref<4x128xf32, #tpu.memory_space<vmem>>, vector<4x128xf32>
    tpu.vector_store %arg7[%c0_13, %c0_14], %14 {strides = array<i32>} : memref<4x128xf32, #tpu.memory_space<vmem>>, vector<4x128xf32>,
    return
  }
  func.func @transform_0(%arg0: i32) -> (i32, i32) {
    %c0_i32 = arith.constant 0 : i32
    %c0_i32_0 = arith.constant 0 : i32
    %c0_i32_1 = arith.constant 0 : i32
    return %c0_i32, %c0_i32_0 : i32, i32
  }
  func.func @transform_1(%arg0: i32) -> (i32, i32) {
    %c0_i32 = arith.constant 0 : i32
    %c0_i32_0 = arith.constant 0 : i32
    %c0_i32_1 = arith.constant 0 : i32
    return %c0_i32, %c0_i32_0 : i32, i32
  }
  func.func @transform_2(%arg0: i32) -> (i32, i32) {
    %c0_i32 = arith.constant 0 : i32
    %c0_i32_0 = arith.constant 0 : i32
    %c0_i32_1 = arith.constant 0 : i32
    return %c0_i32, %c0_i32_0 : i32, i32
  }
  func.func @transform_3(%arg0: i32) -> (i32, i32) {
    %c0_i32 = arith.constant 0 : i32
    %c0_i32_0 = arith.constant 0 : i32
    %c0_i32_1 = arith.constant 0 : i32
    return %c0_i32, %c0_i32_0 : i32, i32
  }
  func.func @transform_4(%arg0: i32) -> (i32, i32) {
    %c0_i32 = arith.constant 0 : i32
    %c0_i32_0 = arith.constant 0 : i32
    return %c0_i32, %arg0 : i32, i32
  }
  func.func @transform_5(%arg0: i32) -> (i32, i32) {
    %c0_i32 = arith.constant 0 : i32
    %c0_i32_0 = arith.constant 0 : i32
    return %c0_i32, %arg0 : i32, i32
  }
  func.func @transform_6(%arg0: i32) -> (i32, i32) {
    %c0_i32 = arith.constant 0 : i32
    %c0_i32_0 = arith.constant 0 : i32
    return %c0_i32, %arg0 : i32, i32
  }
}

module attributes {stable_mosaic.version = 11 : i64} {
  func.func @_map_dict_kernel(%arg0: i32, %arg1: memref<256x16xf32, #tpu.memory_space<vmem>>, %arg2: memref<256x1xf32, #tpu.memory_space<vmem>>, %arg3: memref<16x256xf32, #tpu.memory_space<vmem>>, %arg4: memref<16x1xf32, #tpu.memory_space<vmem>>, %arg5: memref<8x16xf32, #tpu.memory_space<vmem>>, %arg6: memref<64x8xf32, #tpu.memory_space<vmem>>, %arg7: memref<16x128xf32, #tpu.memory_space<vmem>>, %arg8: memref<16x128xf32, #tpu.memory_space<vmem>>, %arg9: memref<64x128xf32, #tpu.memory_space<vmem>>) attributes {dimension_semantics = [#tpu.dimension_semantics<parallel>], iteration_bounds = array<i64: 1>, scalar_prefetch = 0 : i64, scratch_operands = 0 : i64, tpu.core_type = #tpu.core_type<tc>, window_params = [{pipeline_mode = #tpu.pipeline_mode<synchronous>, transform_indices = @transform_0, window_bounds = array<i64: 256, 16>}, {pipeline_mode = #tpu.pipeline_mode<synchronous>, transform_indices = @transform_1, window_bounds = array<i64: 256, 1>}, {pipeline_mode = #tpu.pipeline_mode<synchronous>, transform_indices = @transform_2, window_bounds = array<i64: 16, 256>}, {pipeline_mode = #tpu.pipeline_mode<synchronous>, transform_indices = @transform_3, window_bounds = array<i64: 16, 1>}, {pipeline_mode = #tpu.pipeline_mode<synchronous>, transform_indices = @transform_4, window_bounds = array<i64: 8, 16>}, {pipeline_mode = #tpu.pipeline_mode<synchronous>, transform_indices = @transform_5, window_bounds = array<i64: 64, 8>}, {transform_indices = @transform_6, window_bounds = array<i64: 16, 128>}, {transform_indices = @transform_7, window_bounds = array<i64: 16, 128>}, {transform_indices = @transform_8, window_bounds = array<i64: 64, 128>}]} {
    %c0 = arith.constant 0 : index
    %c0_0 = arith.constant 0 : index
    %0 = vector.load %arg1[%c0, %c0_0] : memref<256x16xf32, #tpu.memory_space<vmem>>, vector<256x16xf32>
    %c0_1 = arith.constant 0 : index
    %c0_2 = arith.constant 0 : index
    %1 = vector.load %arg7[%c0_1, %c0_2] : memref<16x128xf32, #tpu.memory_space<vmem>>, vector<16x128xf32>
    %cst = arith.constant dense<0.000000e+00> : vector<256x128xf32>
    %2 = tpu.matmul %0, %1, %cst {dimension_numbers = #tpu.dot_dimension_numbers<[1], [0], [0], [1], [0, 0, 1, 1], [], []>} : vector<256x16xf32>, vector<16x128xf32>, vector<256x128xf32> -> vector<256x128xf32>
    %c0_3 = arith.constant 0 : index
    %c0_4 = arith.constant 0 : index
    %3 = vector.load %arg2[%c0_3, %c0_4] : memref<256x1xf32, #tpu.memory_space<vmem>>, vector<256x1xf32>
    %4 = vector.broadcast %3 : vector<256x1xf32> to vector<256x128xf32>
    %5 = arith.addf %2, %4 : vector<256x128xf32>
    %cst_5 = arith.constant 0.000000e+00 : f32
    %6 = vector.broadcast %cst_5 : f32 to vector<256x128xf32>
    %7 = arith.maximumf %5, %6 : vector<256x128xf32>
    %c0_6 = arith.constant 0 : index
    %c0_7 = arith.constant 0 : index
    %8 = vector.load %arg3[%c0_6, %c0_7] : memref<16x256xf32, #tpu.memory_space<vmem>>, vector<16x256xf32>
    %cst_8 = arith.constant dense<0.000000e+00> : vector<16x128xf32>
    %9 = tpu.matmul %8, %7, %cst_8 {dimension_numbers = #tpu.dot_dimension_numbers<[1], [0], [0], [1], [0, 0, 1, 1], [], []>} : vector<16x256xf32>, vector<256x128xf32>, vector<16x128xf32> -> vector<16x128xf32>
    %c0_9 = arith.constant 0 : index
    %c0_10 = arith.constant 0 : index
    %10 = vector.load %arg4[%c0_9, %c0_10] : memref<16x1xf32, #tpu.memory_space<vmem>>, vector<16x1xf32>
    %11 = vector.broadcast %10 : vector<16x1xf32> to vector<16x128xf32>
    %12 = arith.addf %9, %11 : vector<16x128xf32>
    %c0_11 = arith.constant 0 : index
    %c0_12 = arith.constant 0 : index
    %13 = vector.load %arg8[%c0_11, %c0_12] : memref<16x128xf32, #tpu.memory_space<vmem>>, vector<16x128xf32>
    tpu.vector_store %arg8[%c0_11, %c0_12], %12 {strides = array<i32>} : memref<16x128xf32, #tpu.memory_space<vmem>>, vector<16x128xf32>,
    %c0_13 = arith.constant 0 : index
    %c0_14 = arith.constant 0 : index
    %14 = vector.load %arg5[%c0_13, %c0_14] : memref<8x16xf32, #tpu.memory_space<vmem>>, vector<8x16xf32>
    %cst_15 = arith.constant dense<0.000000e+00> : vector<8x128xf32>
    %15 = tpu.matmul %14, %12, %cst_15 {dimension_numbers = #tpu.dot_dimension_numbers<[1], [0], [0], [1], [0, 0, 1, 1], [], []>} : vector<8x16xf32>, vector<16x128xf32>, vector<8x128xf32> -> vector<8x128xf32>
    %16 = arith.mulf %12, %12 : vector<16x128xf32>
    %cst_16 = arith.constant dense<0.000000e+00> : vector<128xf32>
    %17 = vector.multi_reduction <add>, %16, %cst_16 [0] : vector<16x128xf32> to vector<128xf32>
    %18 = vector.shape_cast %17 : vector<128xf32> to vector<1x128xf32>
    %19 = math.sqrt %18 : vector<1x128xf32>
    %cst_17 = arith.constant 9.99999993E-9 : f32
    %20 = vector.broadcast %cst_17 : f32 to vector<1x128xf32>
    %21 = arith.maximumf %19, %20 : vector<1x128xf32>
    %22 = tpu.reciprocal %21 {approx = true} : vector<1x128xf32> -> vector<1x128xf32>
    %23 = vector.broadcast %22 : vector<1x128xf32> to vector<8x128xf32>
    %24 = arith.mulf %15, %23 : vector<8x128xf32>
    %cst_18 = arith.constant dense<0xFF800000> : vector<128xf32>
    %25 = vector.multi_reduction <maximumf>, %24, %cst_18 [0] : vector<8x128xf32> to vector<128xf32>
    %26 = vector.shape_cast %25 : vector<128xf32> to vector<1x128xf32>
    %27 = vector.broadcast %26 : vector<1x128xf32> to vector<8x128xf32>
    %28 = arith.cmpf olt, %24, %27 : vector<8x128xf32>
    %cst_19 = arith.constant 0.000000e+00 : f32
    %29 = vector.broadcast %cst_19 : f32 to vector<8x128xf32>
    %30 = arith.select %28, %29, %24 : vector<8x128xi1>, vector<8x128xf32>
    %c0_20 = arith.constant 0 : index
    %c0_21 = arith.constant 0 : index
    %31 = vector.load %arg6[%c0_20, %c0_21] : memref<64x8xf32, #tpu.memory_space<vmem>>, vector<64x8xf32>
    %cst_22 = arith.constant dense<0.000000e+00> : vector<64x128xf32>
    %32 = tpu.matmul %31, %30, %cst_22 {dimension_numbers = #tpu.dot_dimension_numbers<[1], [0], [0], [1], [0, 0, 1, 1], [], []>} : vector<64x8xf32>, vector<8x128xf32>, vector<64x128xf32> -> vector<64x128xf32>
    %c0_23 = arith.constant 0 : index
    %c0_24 = arith.constant 0 : index
    %33 = vector.load %arg9[%c0_23, %c0_24] : memref<64x128xf32, #tpu.memory_space<vmem>>, vector<64x128xf32>
    tpu.vector_store %arg9[%c0_23, %c0_24], %32 {strides = array<i32>} : memref<64x128xf32, #tpu.memory_space<vmem>>, vector<64x128xf32>,
    return
  }
  func.func @transform_0(%arg0: i32) -> (i32, i32) {
    %c0_i32 = arith.constant 0 : i32
    %c0_i32_0 = arith.constant 0 : i32
    %c0_i32_1 = arith.constant 0 : i32
    return %c0_i32, %c0_i32_0 : i32, i32
  }
  func.func @transform_1(%arg0: i32) -> (i32, i32) {
    %c0_i32 = arith.constant 0 : i32
    %c0_i32_0 = arith.constant 0 : i32
    %c0_i32_1 = arith.constant 0 : i32
    return %c0_i32, %c0_i32_0 : i32, i32
  }
  func.func @transform_2(%arg0: i32) -> (i32, i32) {
    %c0_i32 = arith.constant 0 : i32
    %c0_i32_0 = arith.constant 0 : i32
    %c0_i32_1 = arith.constant 0 : i32
    return %c0_i32, %c0_i32_0 : i32, i32
  }
  func.func @transform_3(%arg0: i32) -> (i32, i32) {
    %c0_i32 = arith.constant 0 : i32
    %c0_i32_0 = arith.constant 0 : i32
    %c0_i32_1 = arith.constant 0 : i32
    return %c0_i32, %c0_i32_0 : i32, i32
  }
  func.func @transform_4(%arg0: i32) -> (i32, i32) {
    %c0_i32 = arith.constant 0 : i32
    %c0_i32_0 = arith.constant 0 : i32
    %c0_i32_1 = arith.constant 0 : i32
    return %c0_i32, %c0_i32_0 : i32, i32
  }
  func.func @transform_5(%arg0: i32) -> (i32, i32) {
    %c0_i32 = arith.constant 0 : i32
    %c0_i32_0 = arith.constant 0 : i32
    %c0_i32_1 = arith.constant 0 : i32
    return %c0_i32, %c0_i32_0 : i32, i32
  }
  func.func @transform_6(%arg0: i32) -> (i32, i32) {
    %c0_i32 = arith.constant 0 : i32
    %c0_i32_0 = arith.constant 0 : i32
    return %c0_i32, %arg0 : i32, i32
  }
  func.func @transform_7(%arg0: i32) -> (i32, i32) {
    %c0_i32 = arith.constant 0 : i32
    %c0_i32_0 = arith.constant 0 : i32
    return %c0_i32, %arg0 : i32, i32
  }
  func.func @transform_8(%arg0: i32) -> (i32, i32) {
    %c0_i32 = arith.constant 0 : i32
    %c0_i32_0 = arith.constant 0 : i32
    return %c0_i32, %arg0 : i32, i32
  }
}

module attributes {stable_mosaic.version = 11 : i64} {
  func.func @_mmT_kernel(%arg0: i32, %arg1: memref<4x8xbf16, #tpu.memory_space<vmem>>, %arg2: memref<4x1xf32, #tpu.memory_space<vmem>>, %arg3: memref<8x512xbf16, #tpu.memory_space<vmem>>, %arg4: memref<4x512xf32, #tpu.memory_space<vmem>>) attributes {dimension_semantics = [#tpu.dimension_semantics<parallel>], iteration_bounds = array<i64: 1>, scalar_prefetch = 0 : i64, scratch_operands = 0 : i64, tpu.core_type = #tpu.core_type<tc>, window_params = [{pipeline_mode = #tpu.pipeline_mode<synchronous>, transform_indices = @transform_0, window_bounds = array<i64: 4, 8>}, {pipeline_mode = #tpu.pipeline_mode<synchronous>, transform_indices = @transform_1, window_bounds = array<i64: 4, 1>}, {transform_indices = @transform_2, window_bounds = array<i64: 8, 512>}, {transform_indices = @transform_3, window_bounds = array<i64: 4, 512>}]} {
    %c0 = arith.constant 0 : index
    %c0_0 = arith.constant 0 : index
    %0 = vector.load %arg1[%c0, %c0_0] : memref<4x8xbf16, #tpu.memory_space<vmem>>, vector<4x8xbf16>
    %c0_1 = arith.constant 0 : index
    %c0_2 = arith.constant 0 : index
    %1 = vector.load %arg3[%c0_1, %c0_2] : memref<8x512xbf16, #tpu.memory_space<vmem>>, vector<8x512xbf16>
    %cst = arith.constant dense<0.000000e+00> : vector<4x512xf32>
    %2 = tpu.matmul %0, %1, %cst {dimension_numbers = #tpu.dot_dimension_numbers<[1], [0], [0], [1], [0, 0, 1, 1], [], []>} : vector<4x8xbf16>, vector<8x512xbf16>, vector<4x512xf32> -> vector<4x512xf32>
    %c0_3 = arith.constant 0 : index
    %c0_4 = arith.constant 0 : index
    %3 = vector.load %arg2[%c0_3, %c0_4] : memref<4x1xf32, #tpu.memory_space<vmem>>, vector<4x1xf32>
    %4 = vector.broadcast %3 : vector<4x1xf32> to vector<4x512xf32>
    %5 = arith.addf %2, %4 : vector<4x512xf32>
    %c0_5 = arith.constant 0 : index
    %c0_6 = arith.constant 0 : index
    %6 = vector.load %arg4[%c0_5, %c0_6] : memref<4x512xf32, #tpu.memory_space<vmem>>, vector<4x512xf32>
    tpu.vector_store %arg4[%c0_5, %c0_6], %5 {strides = array<i32>} : memref<4x512xf32, #tpu.memory_space<vmem>>, vector<4x512xf32>,
    return
  }
  func.func @transform_0(%arg0: i32) -> (i32, i32) {
    %c0_i32 = arith.constant 0 : i32
    %c0_i32_0 = arith.constant 0 : i32
    %c0_i32_1 = arith.constant 0 : i32
    return %c0_i32, %c0_i32_0 : i32, i32
  }
  func.func @transform_1(%arg0: i32) -> (i32, i32) {
    %c0_i32 = arith.constant 0 : i32
    %c0_i32_0 = arith.constant 0 : i32
    %c0_i32_1 = arith.constant 0 : i32
    return %c0_i32, %c0_i32_0 : i32, i32
  }
  func.func @transform_2(%arg0: i32) -> (i32, i32) {
    %c0_i32 = arith.constant 0 : i32
    %c0_i32_0 = arith.constant 0 : i32
    return %c0_i32, %arg0 : i32, i32
  }
  func.func @transform_3(%arg0: i32) -> (i32, i32) {
    %c0_i32 = arith.constant 0 : i32
    %c0_i32_0 = arith.constant 0 : i32
    return %c0_i32, %arg0 : i32, i32
  }
}

module attributes {stable_mosaic.version = 11 : i64} {
  func.func @_mmT_kernel(%arg0: i32, %arg1: memref<4x36xbf16, #tpu.memory_space<vmem>>, %arg2: memref<4x1xf32, #tpu.memory_space<vmem>>, %arg3: memref<36x512xbf16, #tpu.memory_space<vmem>>, %arg4: memref<4x512xf32, #tpu.memory_space<vmem>>) attributes {dimension_semantics = [#tpu.dimension_semantics<parallel>], iteration_bounds = array<i64: 1>, scalar_prefetch = 0 : i64, scratch_operands = 0 : i64, tpu.core_type = #tpu.core_type<tc>, window_params = [{pipeline_mode = #tpu.pipeline_mode<synchronous>, transform_indices = @transform_0, window_bounds = array<i64: 4, 36>}, {pipeline_mode = #tpu.pipeline_mode<synchronous>, transform_indices = @transform_1, window_bounds = array<i64: 4, 1>}, {transform_indices = @transform_2, window_bounds = array<i64: 36, 512>}, {transform_indices = @transform_3, window_bounds = array<i64: 4, 512>}]} {
    %c0 = arith.constant 0 : index
    %c0_0 = arith.constant 0 : index
    %0 = vector.load %arg1[%c0, %c0_0] : memref<4x36xbf16, #tpu.memory_space<vmem>>, vector<4x36xbf16>
    %c0_1 = arith.constant 0 : index
    %c0_2 = arith.constant 0 : index
    %1 = vector.load %arg3[%c0_1, %c0_2] : memref<36x512xbf16, #tpu.memory_space<vmem>>, vector<36x512xbf16>
    %cst = arith.constant dense<0.000000e+00> : vector<4x512xf32>
    %2 = tpu.matmul %0, %1, %cst {dimension_numbers = #tpu.dot_dimension_numbers<[1], [0], [0], [1], [0, 0, 1, 1], [], []>} : vector<4x36xbf16>, vector<36x512xbf16>, vector<4x512xf32> -> vector<4x512xf32>
    %c0_3 = arith.constant 0 : index
    %c0_4 = arith.constant 0 : index
    %3 = vector.load %arg2[%c0_3, %c0_4] : memref<4x1xf32, #tpu.memory_space<vmem>>, vector<4x1xf32>
    %4 = vector.broadcast %3 : vector<4x1xf32> to vector<4x512xf32>
    %5 = arith.addf %2, %4 : vector<4x512xf32>
    %cst_5 = arith.constant 0.000000e+00 : f32
    %6 = vector.broadcast %cst_5 : f32 to vector<4x512xf32>
    %7 = arith.maximumf %5, %6 : vector<4x512xf32>
    %c0_6 = arith.constant 0 : index
    %c0_7 = arith.constant 0 : index
    %8 = vector.load %arg4[%c0_6, %c0_7] : memref<4x512xf32, #tpu.memory_space<vmem>>, vector<4x512xf32>
    tpu.vector_store %arg4[%c0_6, %c0_7], %7 {strides = array<i32>} : memref<4x512xf32, #tpu.memory_space<vmem>>, vector<4x512xf32>,
    return
  }
  func.func @transform_0(%arg0: i32) -> (i32, i32) {
    %c0_i32 = arith.constant 0 : i32
    %c0_i32_0 = arith.constant 0 : i32
    %c0_i32_1 = arith.constant 0 : i32
    return %c0_i32, %c0_i32_0 : i32, i32
  }
  func.func @transform_1(%arg0: i32) -> (i32, i32) {
    %c0_i32 = arith.constant 0 : i32
    %c0_i32_0 = arith.constant 0 : i32
    %c0_i32_1 = arith.constant 0 : i32
    return %c0_i32, %c0_i32_0 : i32, i32
  }
  func.func @transform_2(%arg0: i32) -> (i32, i32) {
    %c0_i32 = arith.constant 0 : i32
    %c0_i32_0 = arith.constant 0 : i32
    return %c0_i32, %arg0 : i32, i32
  }
  func.func @transform_3(%arg0: i32) -> (i32, i32) {
    %c0_i32 = arith.constant 0 : i32
    %c0_i32_0 = arith.constant 0 : i32
    return %c0_i32, %arg0 : i32, i32
  }
}

module attributes {stable_mosaic.version = 11 : i64} {
  func.func @_mmT_chain_kernel(%arg0: i32, %arg1: memref<4x36xbf16, #tpu.memory_space<vmem>>, %arg2: memref<4x1xf32, #tpu.memory_space<vmem>>, %arg3: memref<1x4xf32, #tpu.memory_space<vmem>>, %arg4: memref<1x1xf32, #tpu.memory_space<vmem>>, %arg5: memref<36x512xbf16, #tpu.memory_space<vmem>>, %arg6: memref<4x512xf32, #tpu.memory_space<vmem>>, %arg7: memref<4x512xf32, #tpu.memory_space<vmem>>) attributes {dimension_semantics = [#tpu.dimension_semantics<parallel>], iteration_bounds = array<i64: 1>, scalar_prefetch = 0 : i64, scratch_operands = 0 : i64, tpu.core_type = #tpu.core_type<tc>, window_params = [{pipeline_mode = #tpu.pipeline_mode<synchronous>, transform_indices = @transform_0, window_bounds = array<i64: 4, 36>}, {pipeline_mode = #tpu.pipeline_mode<synchronous>, transform_indices = @transform_1, window_bounds = array<i64: 4, 1>}, {pipeline_mode = #tpu.pipeline_mode<synchronous>, transform_indices = @transform_2, window_bounds = array<i64: 1, 4>}, {pipeline_mode = #tpu.pipeline_mode<synchronous>, transform_indices = @transform_3, window_bounds = array<i64: 1, 1>}, {transform_indices = @transform_4, window_bounds = array<i64: 36, 512>}, {transform_indices = @transform_5, window_bounds = array<i64: 4, 512>}, {transform_indices = @transform_6, window_bounds = array<i64: 4, 512>}]} {
    %c0 = arith.constant 0 : index
    %c0_0 = arith.constant 0 : index
    %0 = vector.load %arg1[%c0, %c0_0] : memref<4x36xbf16, #tpu.memory_space<vmem>>, vector<4x36xbf16>
    %c0_1 = arith.constant 0 : index
    %c0_2 = arith.constant 0 : index
    %1 = vector.load %arg5[%c0_1, %c0_2] : memref<36x512xbf16, #tpu.memory_space<vmem>>, vector<36x512xbf16>
    %cst = arith.constant dense<0.000000e+00> : vector<4x512xf32>
    %2 = tpu.matmul %0, %1, %cst {dimension_numbers = #tpu.dot_dimension_numbers<[1], [0], [0], [1], [0, 0, 1, 1], [], []>} : vector<4x36xbf16>, vector<36x512xbf16>, vector<4x512xf32> -> vector<4x512xf32>
    %c0_3 = arith.constant 0 : index
    %c0_4 = arith.constant 0 : index
    %3 = vector.load %arg2[%c0_3, %c0_4] : memref<4x1xf32, #tpu.memory_space<vmem>>, vector<4x1xf32>
    %4 = vector.broadcast %3 : vector<4x1xf32> to vector<4x512xf32>
    %5 = arith.addf %2, %4 : vector<4x512xf32>
    %cst_5 = arith.constant 0.000000e+00 : f32
    %6 = vector.broadcast %cst_5 : f32 to vector<4x512xf32>
    %7 = arith.maximumf %5, %6 : vector<4x512xf32>
    %c0_6 = arith.constant 0 : index
    %c0_7 = arith.constant 0 : index
    %8 = vector.load %arg3[%c0_6, %c0_7] : memref<1x4xf32, #tpu.memory_space<vmem>>, vector<1x4xf32>
    %cst_8 = arith.constant dense<0.000000e+00> : vector<1x512xf32>
    %9 = tpu.matmul %8, %7, %cst_8 {dimension_numbers = #tpu.dot_dimension_numbers<[1], [0], [0], [1], [0, 0, 1, 1], [], []>} : vector<1x4xf32>, vector<4x512xf32>, vector<1x512xf32> -> vector<1x512xf32>
    %c0_9 = arith.constant 0 : index
    %c0_10 = arith.constant 0 : index
    %10 = vector.load %arg4[%c0_9, %c0_10] : memref<1x1xf32, #tpu.memory_space<vmem>>, vector<1x1xf32>
    %11 = vector.broadcast %10 : vector<1x1xf32> to vector<1x512xf32>
    %12 = arith.addf %9, %11 : vector<1x512xf32>
    %c0_11 = arith.constant 0 : index
    %c0_12 = arith.constant 0 : index
    %13 = vector.load %arg6[%c0_11, %c0_12] : memref<4x512xf32, #tpu.memory_space<vmem>>, vector<4x512xf32>
    %14 = vector.broadcast %12 : vector<1x512xf32> to vector<4x512xf32>
    %15 = arith.mulf %13, %14 : vector<4x512xf32>
    %c0_13 = arith.constant 0 : index
    %c0_14 = arith.constant 0 : index
    %16 = vector.load %arg7[%c0_13, %c0_14] : memref<4x512xf32, #tpu.memory_space<vmem>>, vector<4x512xf32>
    tpu.vector_store %arg7[%c0_13, %c0_14], %15 {strides = array<i32>} : memref<4x512xf32, #tpu.memory_space<vmem>>, vector<4x512xf32>,
    return
  }
  func.func @transform_0(%arg0: i32) -> (i32, i32) {
    %c0_i32 = arith.constant 0 : i32
    %c0_i32_0 = arith.constant 0 : i32
    %c0_i32_1 = arith.constant 0 : i32
    return %c0_i32, %c0_i32_0 : i32, i32
  }
  func.func @transform_1(%arg0: i32) -> (i32, i32) {
    %c0_i32 = arith.constant 0 : i32
    %c0_i32_0 = arith.constant 0 : i32
    %c0_i32_1 = arith.constant 0 : i32
    return %c0_i32, %c0_i32_0 : i32, i32
  }
  func.func @transform_2(%arg0: i32) -> (i32, i32) {
    %c0_i32 = arith.constant 0 : i32
    %c0_i32_0 = arith.constant 0 : i32
    %c0_i32_1 = arith.constant 0 : i32
    return %c0_i32, %c0_i32_0 : i32, i32
  }
  func.func @transform_3(%arg0: i32) -> (i32, i32) {
    %c0_i32 = arith.constant 0 : i32
    %c0_i32_0 = arith.constant 0 : i32
    %c0_i32_1 = arith.constant 0 : i32
    return %c0_i32, %c0_i32_0 : i32, i32
  }
  func.func @transform_4(%arg0: i32) -> (i32, i32) {
    %c0_i32 = arith.constant 0 : i32
    %c0_i32_0 = arith.constant 0 : i32
    return %c0_i32, %arg0 : i32, i32
  }
  func.func @transform_5(%arg0: i32) -> (i32, i32) {
    %c0_i32 = arith.constant 0 : i32
    %c0_i32_0 = arith.constant 0 : i32
    return %c0_i32, %arg0 : i32, i32
  }
  func.func @transform_6(%arg0: i32) -> (i32, i32) {
    %c0_i32 = arith.constant 0 : i32
    %c0_i32_0 = arith.constant 0 : i32
    return %c0_i32, %arg0 : i32, i32
  }
}

module attributes {stable_mosaic.version = 11 : i64} {
  func.func @_mmT_kernel(%arg0: i32, %arg1: memref<4x36xbf16, #tpu.memory_space<vmem>>, %arg2: memref<4x1xf32, #tpu.memory_space<vmem>>, %arg3: memref<36x128xbf16, #tpu.memory_space<vmem>>, %arg4: memref<4x128xf32, #tpu.memory_space<vmem>>) attributes {dimension_semantics = [#tpu.dimension_semantics<parallel>], iteration_bounds = array<i64: 1>, scalar_prefetch = 0 : i64, scratch_operands = 0 : i64, tpu.core_type = #tpu.core_type<tc>, window_params = [{pipeline_mode = #tpu.pipeline_mode<synchronous>, transform_indices = @transform_0, window_bounds = array<i64: 4, 36>}, {pipeline_mode = #tpu.pipeline_mode<synchronous>, transform_indices = @transform_1, window_bounds = array<i64: 4, 1>}, {transform_indices = @transform_2, window_bounds = array<i64: 36, 128>}, {transform_indices = @transform_3, window_bounds = array<i64: 4, 128>}]} {
    %c0 = arith.constant 0 : index
    %c0_0 = arith.constant 0 : index
    %0 = vector.load %arg1[%c0, %c0_0] : memref<4x36xbf16, #tpu.memory_space<vmem>>, vector<4x36xbf16>
    %c0_1 = arith.constant 0 : index
    %c0_2 = arith.constant 0 : index
    %1 = vector.load %arg3[%c0_1, %c0_2] : memref<36x128xbf16, #tpu.memory_space<vmem>>, vector<36x128xbf16>
    %cst = arith.constant dense<0.000000e+00> : vector<4x128xf32>
    %2 = tpu.matmul %0, %1, %cst {dimension_numbers = #tpu.dot_dimension_numbers<[1], [0], [0], [1], [0, 0, 1, 1], [], []>} : vector<4x36xbf16>, vector<36x128xbf16>, vector<4x128xf32> -> vector<4x128xf32>
    %c0_3 = arith.constant 0 : index
    %c0_4 = arith.constant 0 : index
    %3 = vector.load %arg2[%c0_3, %c0_4] : memref<4x1xf32, #tpu.memory_space<vmem>>, vector<4x1xf32>
    %4 = vector.broadcast %3 : vector<4x1xf32> to vector<4x128xf32>
    %5 = arith.addf %2, %4 : vector<4x128xf32>
    %c0_5 = arith.constant 0 : index
    %c0_6 = arith.constant 0 : index
    %6 = vector.load %arg4[%c0_5, %c0_6] : memref<4x128xf32, #tpu.memory_space<vmem>>, vector<4x128xf32>
    tpu.vector_store %arg4[%c0_5, %c0_6], %5 {strides = array<i32>} : memref<4x128xf32, #tpu.memory_space<vmem>>, vector<4x128xf32>,
    return
  }
  func.func @transform_0(%arg0: i32) -> (i32, i32) {
    %c0_i32 = arith.constant 0 : i32
    %c0_i32_0 = arith.constant 0 : i32
    %c0_i32_1 = arith.constant 0 : i32
    return %c0_i32, %c0_i32_0 : i32, i32
  }
  func.func @transform_1(%arg0: i32) -> (i32, i32) {
    %c0_i32 = arith.constant 0 : i32
    %c0_i32_0 = arith.constant 0 : i32
    %c0_i32_1 = arith.constant 0 : i32
    return %c0_i32, %c0_i32_0 : i32, i32
  }
  func.func @transform_2(%arg0: i32) -> (i32, i32) {
    %c0_i32 = arith.constant 0 : i32
    %c0_i32_0 = arith.constant 0 : i32
    return %c0_i32, %arg0 : i32, i32
  }
  func.func @transform_3(%arg0: i32) -> (i32, i32) {
    %c0_i32 = arith.constant 0 : i32
    %c0_i32_0 = arith.constant 0 : i32
    return %c0_i32, %arg0 : i32, i32
  }
}

module attributes {stable_mosaic.version = 11 : i64} {
  func.func @_mmT_kernel(%arg0: i32, %arg1: memref<8x72xbf16, #tpu.memory_space<vmem>>, %arg2: memref<8x1xf32, #tpu.memory_space<vmem>>, %arg3: memref<72x128xbf16, #tpu.memory_space<vmem>>, %arg4: memref<8x128xf32, #tpu.memory_space<vmem>>) attributes {dimension_semantics = [#tpu.dimension_semantics<parallel>], iteration_bounds = array<i64: 1>, scalar_prefetch = 0 : i64, scratch_operands = 0 : i64, tpu.core_type = #tpu.core_type<tc>, window_params = [{pipeline_mode = #tpu.pipeline_mode<synchronous>, transform_indices = @transform_0, window_bounds = array<i64: 8, 72>}, {pipeline_mode = #tpu.pipeline_mode<synchronous>, transform_indices = @transform_1, window_bounds = array<i64: 8, 1>}, {transform_indices = @transform_2, window_bounds = array<i64: 72, 128>}, {transform_indices = @transform_3, window_bounds = array<i64: 8, 128>}]} {
    %c0 = arith.constant 0 : index
    %c0_0 = arith.constant 0 : index
    %0 = vector.load %arg1[%c0, %c0_0] : memref<8x72xbf16, #tpu.memory_space<vmem>>, vector<8x72xbf16>
    %c0_1 = arith.constant 0 : index
    %c0_2 = arith.constant 0 : index
    %1 = vector.load %arg3[%c0_1, %c0_2] : memref<72x128xbf16, #tpu.memory_space<vmem>>, vector<72x128xbf16>
    %cst = arith.constant dense<0.000000e+00> : vector<8x128xf32>
    %2 = tpu.matmul %0, %1, %cst {dimension_numbers = #tpu.dot_dimension_numbers<[1], [0], [0], [1], [0, 0, 1, 1], [], []>} : vector<8x72xbf16>, vector<72x128xbf16>, vector<8x128xf32> -> vector<8x128xf32>
    %c0_3 = arith.constant 0 : index
    %c0_4 = arith.constant 0 : index
    %3 = vector.load %arg2[%c0_3, %c0_4] : memref<8x1xf32, #tpu.memory_space<vmem>>, vector<8x1xf32>
    %4 = vector.broadcast %3 : vector<8x1xf32> to vector<8x128xf32>
    %5 = arith.addf %2, %4 : vector<8x128xf32>
    %cst_5 = arith.constant 0.000000e+00 : f32
    %6 = vector.broadcast %cst_5 : f32 to vector<8x128xf32>
    %7 = arith.maximumf %5, %6 : vector<8x128xf32>
    %c0_6 = arith.constant 0 : index
    %c0_7 = arith.constant 0 : index
    %8 = vector.load %arg4[%c0_6, %c0_7] : memref<8x128xf32, #tpu.memory_space<vmem>>, vector<8x128xf32>
    tpu.vector_store %arg4[%c0_6, %c0_7], %7 {strides = array<i32>} : memref<8x128xf32, #tpu.memory_space<vmem>>, vector<8x128xf32>,
    return
  }
  func.func @transform_0(%arg0: i32) -> (i32, i32) {
    %c0_i32 = arith.constant 0 : i32
    %c0_i32_0 = arith.constant 0 : i32
    %c0_i32_1 = arith.constant 0 : i32
    return %c0_i32, %c0_i32_0 : i32, i32
  }
  func.func @transform_1(%arg0: i32) -> (i32, i32) {
    %c0_i32 = arith.constant 0 : i32
    %c0_i32_0 = arith.constant 0 : i32
    %c0_i32_1 = arith.constant 0 : i32
    return %c0_i32, %c0_i32_0 : i32, i32
  }
  func.func @transform_2(%arg0: i32) -> (i32, i32) {
    %c0_i32 = arith.constant 0 : i32
    %c0_i32_0 = arith.constant 0 : i32
    return %c0_i32, %arg0 : i32, i32
  }
  func.func @transform_3(%arg0: i32) -> (i32, i32) {
    %c0_i32 = arith.constant 0 : i32
    %c0_i32_0 = arith.constant 0 : i32
    return %c0_i32, %arg0 : i32, i32
  }
}

</mosaic_0001>

<llo_original>
// kernel: mrfb_forward.32
$region0: #{mrfb_forward.32}
  #allocation0 [shape = 'u32[]', space=smem, size = 0x4, offset = 0x4, fixed_abs, tag = 'smem constant byte address 0x4 - core index']
  #allocation1 [shape = 'u32[144,128]{1,0:T(1,128)}', space=vmem, size = 0x12000, scoped, tag = 'internal scratch']
  %s0 = inlined_call_operand.vmem [shape: bf16[8,100], index: 0, kind: input, shape index: {}]
  %s1 = inlined_call_operand.vmem [shape: f32[8,1], index: 1, kind: input, shape index: {}]
  %s2 = inlined_call_operand.vmem [shape: bf16[100,128], index: 2, kind: input, shape index: {}]
  %s3 = inlined_call_operand.vmem [shape: f32[8,128], index: 3, kind: output, shape index: {}]
  %s4 = sld [smem:[#allocation0]]
  $region22: #{mrfb_forward.32} parent=0
    _
  %s6 = ssub.s32 1, %s4
  %s7 = scalar_select 0, %s6, %s4
  // Predicated region
  $region2: #{mrfb_forward.32} parent=0 // pred_check
    _
  $region3: #{mrfb_forward.32} parent=0 // pred_check_branch
    %9 = sbr.rel (0) target = $region5
  $region4: #{mrfb_forward.32} parent=0 // pred_region
    _
  $region5: #{mrfb_forward.32} parent=0 // pred_fallthru
    _
  // Predicated region
  $region6: #{mrfb_forward.32} parent=0 // pred_check
    _
  $region7: #{mrfb_forward.32} parent=0 // pred_check_branch
    %11 = sbr.rel (0) target = $region9
  $region8: #{mrfb_forward.32} parent=0 // pred_region
    _
  $region9: #{mrfb_forward.32} parent=0 // pred_fallthru
    _
  // Predicated region
  $region10: #{mrfb_forward.32} parent=0 // pred_check
    _
  $region11: #{mrfb_forward.32} parent=0 // pred_check_branch
    %13 = sbr.rel (0) target = $region13
  $region12: #{mrfb_forward.32} parent=0 // pred_region
    _
  $region13: #{mrfb_forward.32} parent=0 // pred_fallthru
    _
  %v15 = vld [vmem:[%s0] sm:$0xf]
  %v16 = vld [vmem:[%s2] sm:$0xf]
  %v17 = vld [vmem:[%s2 + $0x4] sm:$0xf]
  %v18 = vld [vmem:[%s2 + $0x8] sm:$0xf]
  %v19 = vld [vmem:[%s2 + $0xc] sm:$0xf]
  %v20 = vld [vmem:[%s2 + $0x10] sm:$0xf]
  %v21 = vld [vmem:[%s2 + $0x14] sm:$0xf]
  %v22 = vld [vmem:[%s2 + $0x18] sm:$0xf]
  %v23 = vld [vmem:[%s2 + $0x1c] sm:$0xf]
  %v24 = vld [vmem:[%s2 + $0x20] sm:$0xf]
  %v25 = vld [vmem:[%s2 + $0x24] sm:$0xf]
  %v26 = vld [vmem:[%s2 + $0x28] sm:$0xf]
  %v27 = vld [vmem:[%s2 + $0x2c] sm:$0xf]
  %v28 = vld [vmem:[%s2 + $0x30] sm:$0x3]
  %v29 = vld [vmem:[%s1] sm:$0xff]
  %31 = vset.pattern.permute.xlu0 0
  %32 = vperm.xlu0 %31, %v29
  %v33 = vpop.permute.xlu0 %32
  %v48 = vunpack.c.l.b16 %v16
  %v49 = vunpack.c.l.b16 %v17
  %v50 = vunpack.c.l.b16 %v18
  %v51 = vunpack.c.l.b16 %v19
  %v52 = vunpack.c.l.b16 %v20
  %v53 = vunpack.c.l.b16 %v21
  %v54 = vunpack.c.l.b16 %v22
  %v55 = vunpack.c.l.b16 %v23
  %v56 = vunpack.c.l.b16 %v24
  %v57 = vunpack.c.l.b16 %v25
  %v58 = vunpack.c.l.b16 %v26
  %v59 = vunpack.c.l.b16 %v27
  %v60 = vunpack.c.l.b16 %v28
  %v61 = vpack.c.b16 %v49, %v48
  %v62 = vpack.c.b16 %v51, %v50
  %v63 = vpack.c.b16 %v53, %v52
  %v64 = vpack.c.b16 %v55, %v54
  %v65 = vpack.c.b16 %v57, %v56
  %v66 = vpack.c.b16 %v59, %v58
  %v67 = vpack.c.b16 %v60, %v60
  %vm74 = vcmask 818176
  %v76 = vsel %vm74, %v15, 0
  %vm78 = vcmask 1041408
  %v80 = vsel %vm78, %v67, 0
  %82 = vmatprep.subr.bf16.mxu0 0
  %83 = vmatpush1.bf16.msra.mxu0 %v61
  %84 = vmatprep.subr.bf16.mxu0 0
  %85 = vmatpush1.bf16.msra.mxu0 %v62
  %86 = vmatprep.subr.bf16.mxu0 0
  %87 = vmatpush1.bf16.msra.mxu0 %v63
  %88 = vmatprep.subr.bf16.mxu0 0
  %89 = vmatpush1.bf16.msra.mxu0 %v64
  %90 = vmatprep.subr.bf16.mxu0 0
  %91 = vmatpush1.bf16.msra.mxu0 %v65
  %92 = vmatprep.subr.bf16.mxu0 0
  %93 = vmatpush1.bf16.msra.mxu0 %v66
  %94 = vmatprep.subr.bf16.mxu0 0
  %95 = vmatpush1.bf16.msra.mxu0 %v80
  %96 = vmatprep.subr.bf16.mxu0 0
  %97 = vmatpush1.bf16.msra.mxu0 0
  %98 = vmatprep.subr.bf16.mxu0 0
  %99 = vmatpush1.bf16.msra.mxu0 0
  %100 = vmatprep.subr.bf16.mxu0 0
  %101 = vmatpush1.bf16.msra.mxu0 0
  %102 = vmatprep.subr.bf16.mxu0 0
  %103 = vmatpush1.bf16.msra.mxu0 0
  %104 = vmatprep.subr.bf16.mxu0 0
  %105 = vmatpush1.bf16.msra.mxu0 0
  %106 = vmatprep.subr.bf16.mxu0 0
  %107 = vmatpush1.bf16.msra.mxu0 0
  %108 = vmatprep.subr.bf16.mxu0 0
  %109 = vmatpush1.bf16.msra.mxu0 0
  %110 = vmatprep.subr.bf16.mxu0 0
  %111 = vmatpush1.bf16.msra.mxu0 0
  %112 = vmatprep.subr.bf16.mxu0 0
  %113 = vmatpush1.bf16.msra.mxu0 0
  %114 = vmatprep.mubr.bf16.mxu0 0
  %115 = vmatmul.mubr.bf16.gmra.mrb[0].mxu0 %v76
  %v116 = vpop.f32.mrb[0].mxu0
  %v117 = vadd.f32 %v33, %v116
  %v118 = vpop.f32.mrb[0].mxu0
  %v119 = vpop.f32.mrb[0].mxu0
  %v120 = vpop.f32.mrb[0].mxu0
  %121 = vdwg.mxu0
  %v122 = vmax.f32 %v117, 0.0
  %123 = vst [vmem:[%s3] sm:$0xff] %v122
  // Predicated region
  $region14: #{mrfb_forward.32} parent=0 // pred_check
    _
  $region15: #{mrfb_forward.32} parent=0 // pred_check_branch
    %125 = sbr.rel (0) target = $region17
  $region16: #{mrfb_forward.32} parent=0 // pred_region
    _
  $region17: #{mrfb_forward.32} parent=0 // pred_fallthru
    _
  // Predicated region
  $region18: #{mrfb_forward.32} parent=0 // pred_check
    _
  $region19: #{mrfb_forward.32} parent=0 // pred_check_branch
    %127 = sbr.rel (0) target = $region21
  $region20: #{mrfb_forward.32} parent=0 // pred_region
    _
  $region21: #{mrfb_forward.32} parent=0 // pred_fallthru
    _

// kernel: mrfb_forward.33
$region0: #{mrfb_forward.33}
  #allocation0 [shape = 'u32[]', space=smem, size = 0x4, offset = 0x4, fixed_abs, tag = 'smem constant byte address 0x4 - core index']
  #allocation1 [shape = 'u32[144,128]{1,0:T(1,128)}', space=vmem, size = 0x12000, scoped, tag = 'internal scratch']
  %s0 = inlined_call_operand.vmem [shape: bf16[8,200], index: 0, kind: input, shape index: {}]
  %s1 = inlined_call_operand.vmem [shape: f32[8,1], index: 1, kind: input, shape index: {}]
  %s2 = inlined_call_operand.vmem [shape: f32[4,8], index: 2, kind: input, shape index: {}]
  %s3 = inlined_call_operand.vmem [shape: f32[4,1], index: 3, kind: input, shape index: {}]
  %s4 = inlined_call_operand.vmem [shape: bf16[200,128], index: 4, kind: input, shape index: {}]
  %s5 = inlined_call_operand.vmem [shape: f32[4,128], index: 5, kind: input, shape index: {}]
  %s6 = inlined_call_operand.vmem [shape: f32[4,128], index: 6, kind: output, shape index: {}]
  %s7 = sld [smem:[#allocation0]]
  $region34: #{mrfb_forward.33} parent=0
    _
  %s9 = ssub.s32 1, %s7
  %s10 = scalar_select 0, %s9, %s7
  // Predicated region
  $region2: #{mrfb_forward.33} parent=0 // pred_check
    _
  $region3: #{mrfb_forward.33} parent=0 // pred_check_branch
    %12 = sbr.rel (0) target = $region5
  $region4: #{mrfb_forward.33} parent=0 // pred_region
    _
  $region5: #{mrfb_forward.33} parent=0 // pred_fallthru
    _
  // Predicated region
  $region6: #{mrfb_forward.33} parent=0 // pred_check
    _
  $region7: #{mrfb_forward.33} parent=0 // pred_check_branch
    %14 = sbr.rel (0) target = $region9
  $region8: #{mrfb_forward.33} parent=0 // pred_region
    _
  $region9: #{mrfb_forward.33} parent=0 // pred_fallthru
    _
  // Predicated region
  $region10: #{mrfb_forward.33} parent=0 // pred_check
    _
  $region11: #{mrfb_forward.33} parent=0 // pred_check_branch
    %16 = sbr.rel (0) target = $region13
  $region12: #{mrfb_forward.33} parent=0 // pred_region
    _
  $region13: #{mrfb_forward.33} parent=0 // pred_fallthru
    _
  // Predicated region
  $region14: #{mrfb_forward.33} parent=0 // pred_check
    _
  $region15: #{mrfb_forward.33} parent=0 // pred_check_branch
    %18 = sbr.rel (0) target = $region17
  $region16: #{mrfb_forward.33} parent=0 // pred_region
    _
  $region17: #{mrfb_forward.33} parent=0 // pred_fallthru
    _
  // Predicated region
  $region18: #{mrfb_forward.33} parent=0 // pred_check
    _
  $region19: #{mrfb_forward.33} parent=0 // pred_check_branch
    %20 = sbr.rel (0) target = $region21
  $region20: #{mrfb_forward.33} parent=0 // pred_region
    _
  $region21: #{mrfb_forward.33} parent=0 // pred_fallthru
    _
  // Predicated region
  $region22: #{mrfb_forward.33} parent=0 // pred_check
    _
  $region23: #{mrfb_forward.33} parent=0 // pred_check_branch
    %22 = sbr.rel (0) target = $region25
  $region24: #{mrfb_forward.33} parent=0 // pred_region
    _
  $region25: #{mrfb_forward.33} parent=0 // pred_fallthru
    _
  %v24 = vld [vmem:[%s0] sm:$0xff]
  %v25 = vld [vmem:[%s4] sm:$0xf]
  %v26 = vld [vmem:[%s4 + $0x4] sm:$0xf]
  %v27 = vld [vmem:[%s4 + $0x8] sm:$0xf]
  %v28 = vld [vmem:[%s4 + $0xc] sm:$0xf]
  %v29 = vld [vmem:[%s4 + $0x10] sm:$0xf]
  %v30 = vld [vmem:[%s4 + $0x14] sm:$0xf]
  %v31 = vld [vmem:[%s4 + $0x18] sm:$0xf]
  %v32 = vld [vmem:[%s4 + $0x1c] sm:$0xf]
  %v33 = vld [vmem:[%s4 + $0x20] sm:$0xf]
  %v34 = vld [vmem:[%s4 + $0x24] sm:$0xf]
  %v35 = vld [vmem:[%s4 + $0x28] sm:$0xf]
  %v36 = vld [vmem:[%s4 + $0x2c] sm:$0xf]
  %v37 = vld [vmem:[%s4 + $0x30] sm:$0xf]
  %v38 = vld [vmem:[%s4 + $0x34] sm:$0xf]
  %v39 = vld [vmem:[%s4 + $0x38] sm:$0xf]
  %v40 = vld [vmem:[%s4 + $0x3c] sm:$0xf]
  %v41 = vld [vmem:[%s4 + $0x40] sm:$0xf]
  %v42 = vld [vmem:[%s4 + $0x44] sm:$0xf]
  %v43 = vld [vmem:[%s4 + $0x48] sm:$0xf]
  %v44 = vld [vmem:[%s4 + $0x4c] sm:$0xf]
  %v45 = vld [vmem:[%s4 + $0x50] sm:$0xf]
  %v46 = vld [vmem:[%s4 + $0x54] sm:$0xf]
  %v47 = vld [vmem:[%s4 + $0x58] sm:$0xf]
  %v48 = vld [vmem:[%s4 + $0x5c] sm:$0xf]
  %v49 = vld [vmem:[%s4 + $0x60] sm:$0xf]
  %v50 = vld [vmem:[%s1] sm:$0xff]
  %52 = vset.pattern.permute.xlu0 0
  %53 = vperm.xlu0 %52, %v50
  %v54 = vpop.permute.xlu0 %53
  %v57 = vunpack.c.l.b16 %v24
  %v58 = vunpack.c.h.b16 %v24
  %v59 = vpack.c.b16 %v57, %v57
  %v60 = vpack.c.b16 %v58, %v58
  %v87 = vunpack.c.l.b16 %v25
  %v88 = vunpack.c.l.b16 %v26
  %v89 = vunpack.c.l.b16 %v27
  %v90 = vunpack.c.l.b16 %v28
  %v91 = vunpack.c.l.b16 %v29
  %v92 = vunpack.c.l.b16 %v30
  %v93 = vunpack.c.l.b16 %v31
  %v94 = vunpack.c.l.b16 %v32
  %v95 = vunpack.c.l.b16 %v33
  %v96 = vunpack.c.l.b16 %v34
  %v97 = vunpack.c.l.b16 %v35
  %v98 = vunpack.c.l.b16 %v36
  %v99 = vunpack.c.l.b16 %v37
  %v100 = vunpack.c.l.b16 %v38
  %v101 = vunpack.c.l.b16 %v39
  %v102 = vunpack.c.l.b16 %v40
  %v103 = vunpack.c.l.b16 %v41
  %v104 = vunpack.c.l.b16 %v42
  %v105 = vunpack.c.l.b16 %v43
  %v106 = vunpack.c.l.b16 %v44
  %v107 = vunpack.c.l.b16 %v45
  %v108 = vunpack.c.l.b16 %v46
  %v109 = vunpack.c.l.b16 %v47
  %v110 = vunpack.c.l.b16 %v48
  %v111 = vunpack.c.l.b16 %v49
  %v112 = vpack.c.b16 %v88, %v87
  %v113 = vpack.c.b16 %v90, %v89
  %v114 = vpack.c.b16 %v92, %v91
  %v115 = vpack.c.b16 %v94, %v93
  %v116 = vpack.c.b16 %v96, %v95
  %v117 = vpack.c.b16 %v98, %v97
  %v118 = vpack.c.b16 %v100, %v99
  %v119 = vpack.c.b16 %v102, %v101
  %v120 = vpack.c.b16 %v104, %v103
  %v121 = vpack.c.b16 %v106, %v105
  %v122 = vpack.c.b16 %v108, %v107
  %v123 = vpack.c.b16 %v110, %v109
  %v124 = vpack.c.b16 %v111, %v111
  %vm137 = vcmask 588800
  %v139 = vsel %vm137, %v60, 0
  %vm141 = vcmask 1043456
  %v143 = vsel %vm141, %v124, 0
  %145 = vmatprep.subr.bf16.mxu0 0
  %146 = vmatpush1.bf16.msra.mxu0 %v112
  %147 = vmatprep.subr.bf16.mxu0 0
  %148 = vmatpush1.bf16.msra.mxu0 %v113
  %149 = vmatprep.subr.bf16.mxu0 0
  %150 = vmatpush1.bf16.msra.mxu0 %v114
  %151 = vmatprep.subr.bf16.mxu0 0
  %152 = vmatpush1.bf16.msra.mxu0 %v115
  %153 = vmatprep.subr.bf16.mxu0 0
  %154 = vmatpush1.bf16.msra.mxu0 %v116
  %155 = vmatprep.subr.bf16.mxu0 0
  %156 = vmatpush1.bf16.msra.mxu0 %v117
  %157 = vmatprep.subr.bf16.mxu0 0
  %158 = vmatpush1.bf16.msra.mxu0 %v118
  %159 = vmatprep.subr.bf16.mxu0 0
  %160 = vmatpush1.bf16.msra.mxu0 %v119
  %161 = vmatprep.subr.bf16.mxu0 0
  %162 = vmatpush1.bf16.msra.mxu0 %v120
  %163 = vmatprep.subr.bf16.mxu0 0
  %164 = vmatpush1.bf16.msra.mxu0 %v121
  %165 = vmatprep.subr.bf16.mxu0 0
  %166 = vmatpush1.bf16.msra.mxu0 %v122
  %167 = vmatprep.subr.bf16.mxu0 0
  %168 = vmatpush1.bf16.msra.mxu0 %v123
  %169 = vmatprep.subr.bf16.mxu0 0
  %170 = vmatpush1.bf16.msra.mxu0 %v143
  %171 = vmatprep.subr.bf16.mxu0 0
  %172 = vmatpush1.bf16.msra.mxu0 0
  %173 = vmatprep.subr.bf16.mxu0 0
  %174 = vmatpush1.bf16.msra.mxu0 0
  %175 = vmatprep.subr.bf16.mxu0 0
  %176 = vmatpush1.bf16.msra.mxu0 0
  %177 = vmatprep.mubr.bf16.mxu0 %v139
  %178 = vmatmul.mubr.bf16.gmra.mrb[0].mxu0 %v59
  %v179 = vpop.f32.mrb[0].mxu0
  %v180 = vadd.f32 %v54, %v179
  %v181 = vpop.f32.mrb[0].mxu0
  %v182 = vpop.f32.mrb[0].mxu0
  %v183 = vpop.f32.mrb[0].mxu0
  %184 = vdwg.mxu0
  %v185 = vmax.f32 %v180, 0.0
  %v186 = vld [vmem:[%s2] sm:$0xf]
  %v187 = vld [vmem:[%s3] sm:$0xf]
  %189 = vset.pattern.permute.xlu0 0
  %190 = vperm.xlu0 %189, %v187
  %v191 = vpop.permute.xlu0 %190
  %vm193 = vcmask 64512
  %v195 = vsel %vm193, %v186, 0
  %197 = vmatprep.subr.mxu0 0.0
  %198 = vmatpush1.msra.mxu0 %v185
  %199 = vmatprep.subr.mxu0 0.0
  %200 = vmatpush1.msra.mxu0 0.0
  %201 = vmatprep.subr.mxu0 0.0
  %202 = vmatpush1.msra.mxu0 0.0
  %203 = vmatprep.subr.mxu0 0.0
  %204 = vmatpush1.msra.mxu0 0.0
  %205 = vmatprep.subr.mxu0 0.0
  %206 = vmatpush1.msra.mxu0 0.0
  %207 = vmatprep.subr.mxu0 0.0
  %208 = vmatpush1.msra.mxu0 0.0
  %209 = vmatprep.subr.mxu0 0.0
  %210 = vmatpush1.msra.mxu0 0.0
  %211 = vmatprep.subr.mxu0 0.0
  %212 = vmatpush1.msra.mxu0 0.0
  %213 = vmatprep.subr.mxu0 0.0
  %214 = vmatpush1.msra.mxu0 0.0
  %215 = vmatprep.subr.mxu0 0.0
  %216 = vmatpush1.msra.mxu0 0.0
  %217 = vmatprep.subr.mxu0 0.0
  %218 = vmatpush1.msra.mxu0 0.0
  %219 = vmatprep.subr.mxu0 0.0
  %220 = vmatpush1.msra.mxu0 0.0
  %221 = vmatprep.subr.mxu0 0.0
  %222 = vmatpush1.msra.mxu0 0.0
  %223 = vmatprep.subr.mxu0 0.0
  %224 = vmatpush1.msra.mxu0 0.0
  %225 = vmatprep.subr.mxu0 0.0
  %226 = vmatpush1.msra.mxu0 0.0
  %227 = vmatprep.subr.mxu0 0.0
  %228 = vmatpush1.msra.mxu0 0.0
  %229 = vmatprep.subr.mxu0 0.0
  %230 = vmatpush1.msra.mxu0 0.0
  %231 = vmatprep.subr.mxu0 0.0
  %232 = vmatpush1.msra.mxu0 0.0
  %233 = vmatprep.subr.mxu0 0.0
  %234 = vmatpush1.msra.mxu0 0.0
  %235 = vmatprep.subr.mxu0 0.0
  %236 = vmatpush1.msra.mxu0 0.0
  %237 = vmatprep.subr.mxu0 0.0
  %238 = vmatpush1.msra.mxu0 0.0
  %239 = vmatprep.subr.mxu0 0.0
  %240 = vmatpush1.msra.mxu0 0.0
  %241 = vmatprep.subr.mxu0 0.0
  %242 = vmatpush1.msra.mxu0 0.0
  %243 = vmatprep.subr.mxu0 0.0
  %244 = vmatpush1.msra.mxu0 0.0
  %245 = vmatprep.subr.mxu0 0.0
  %246 = vmatpush1.msra.mxu0 0.0
  %247 = vmatprep.subr.mxu0 0.0
  %248 = vmatpush1.msra.mxu0 0.0
  %249 = vmatprep.subr.mxu0 0.0
  %250 = vmatpush1.msra.mxu0 0.0
  %251 = vmatprep.subr.mxu0 0.0
  %252 = vmatpush1.msra.mxu0 0.0
  %253 = vmatprep.subr.mxu0 0.0
  %254 = vmatpush1.msra.mxu0 0.0
  %255 = vmatprep.subr.mxu0 0.0
  %256 = vmatpush1.msra.mxu0 0.0
  %257 = vmatprep.subr.mxu0 0.0
  %258 = vmatpush1.msra.mxu0 0.0
  %259 = vmatprep.subr.mxu0 0.0
  %260 = vmatpush1.msra.mxu0 0.0
  %261 = vmatprep.mubr.f32.mxu0 0.0
  %262 = vmatmul.mubr.f32.gmra.mrb[0].mxu0 %v195
  %v263 = vpop.f32.mrb[0].mxu0
  %v264 = vadd.f32 %v191, %v263
  %v265 = vpop.f32.mrb[0].mxu0
  %266 = vdwg.mxu0
  %v267 = vld [vmem:[%s5] sm:$0xf]
  %v268 = vadd.f32 %v264, %v267
  %269 = vst [vmem:[%s6] sm:$0xf] %v268
  // Predicated region
  $region26: #{mrfb_forward.33} parent=0 // pred_check
    _
  $region27: #{mrfb_forward.33} parent=0 // pred_check_branch
    %271 = sbr.rel (0) target = $region29
  $region28: #{mrfb_forward.33} parent=0 // pred_region
    _
  $region29: #{mrfb_forward.33} parent=0 // pred_fallthru
    _
  // Predicated region
  $region30: #{mrfb_forward.33} parent=0 // pred_check
    _
  $region31: #{mrfb_forward.33} parent=0 // pred_check_branch
    %273 = sbr.rel (0) target = $region33
  $region32: #{mrfb_forward.33} parent=0 // pred_region
    _
  $region33: #{mrfb_forward.33} parent=0 // pred_fallthru
    _

// kernel: mrfb_forward.38
$region0: #{mrfb_forward.38}
  #allocation0 [shape = 'u32[]', space=smem, size = 0x4, offset = 0x4, fixed_abs, tag = 'smem constant byte address 0x4 - core index']
  #allocation1 [shape = 'u32[144,128]{1,0:T(1,128)}', space=vmem, size = 0x12000, scoped, tag = 'internal scratch']
  %s0 = inlined_call_operand.vmem [shape: f32[256,16], index: 0, kind: input, shape index: {}]
  %s1 = inlined_call_operand.vmem [shape: f32[256,1], index: 1, kind: input, shape index: {}]
  %s2 = inlined_call_operand.vmem [shape: f32[16,256], index: 2, kind: input, shape index: {}]
  %s3 = inlined_call_operand.vmem [shape: f32[16,1], index: 3, kind: input, shape index: {}]
  %s4 = inlined_call_operand.vmem [shape: f32[8,16], index: 4, kind: input, shape index: {}]
  %s5 = inlined_call_operand.vmem [shape: f32[64,8], index: 5, kind: input, shape index: {}]
  %s6 = inlined_call_operand.vmem [shape: f32[16,128], index: 6, kind: input, shape index: {}]
  %s7 = inlined_call_operand.vmem [shape: f32[16,128], index: 7, kind: output, shape index: {0}]
  %s8 = inlined_call_operand.vmem [shape: f32[64,128], index: 8, kind: output, shape index: {1}]
  %9 = xla_tuple %s7, %s8
  %s10 = sld [smem:[#allocation0]]
  $region46: #{mrfb_forward.38} parent=0
    _
  %s12 = ssub.s32 1, %s10
  %s13 = scalar_select 0, %s12, %s10
  // Predicated region
  $region2: #{mrfb_forward.38} parent=0 // pred_check
    _
  $region3: #{mrfb_forward.38} parent=0 // pred_check_branch
    %15 = sbr.rel (0) target = $region5
  $region4: #{mrfb_forward.38} parent=0 // pred_region
    _
  $region5: #{mrfb_forward.38} parent=0 // pred_fallthru
    _
  // Predicated region
  $region6: #{mrfb_forward.38} parent=0 // pred_check
    _
  $region7: #{mrfb_forward.38} parent=0 // pred_check_branch
    %17 = sbr.rel (0) target = $region9
  $region8: #{mrfb_forward.38} parent=0 // pred_region
    _
  $region9: #{mrfb_forward.38} parent=0 // pred_fallthru
    _
  // Predicated region
  $region10: #{mrfb_forward.38} parent=0 // pred_check
    _
  $region11: #{mrfb_forward.38} parent=0 // pred_check_branch
    %19 = sbr.rel (0) target = $region13
  $region12: #{mrfb_forward.38} parent=0 // pred_region
    _
  $region13: #{mrfb_forward.38} parent=0 // pred_fallthru
    _
  // Predicated region
  $region14: #{mrfb_forward.38} parent=0 // pred_check
    _
  $region15: #{mrfb_forward.38} parent=0 // pred_check_branch
    %21 = sbr.rel (0) target = $region17
  $region16: #{mrfb_forward.38} parent=0 // pred_region
    _
  $region17: #{mrfb_forward.38} parent=0 // pred_fallthru
    _
  // Predicated region
  $region18: #{mrfb_forward.38} parent=0 // pred_check
    _
  $region19: #{mrfb_forward.38} parent=0 // pred_check_branch
    %23 = sbr.rel (0) target = $region21
  $region20: #{mrfb_forward.38} parent=0 // pred_region
    _
  $region21: #{mrfb_forward.38} parent=0 // pred_fallthru
    _
  // Predicated region
  $region22: #{mrfb_forward.38} parent=0 // pred_check
    _
  $region23: #{mrfb_forward.38} parent=0 // pred_check_branch
    %25 = sbr.rel (0) target = $region25
  $region24: #{mrfb_forward.38} parent=0 // pred_region
    _
  $region25: #{mrfb_forward.38} parent=0 // pred_fallthru
    _
  // Predicated region
  $region26: #{mrfb_forward.38} parent=0 // pred_check
    _
  $region27: #{mrfb_forward.38} parent=0 // pred_check_branch
    %27 = sbr.rel (0) target = $region29
  $region28: #{mrfb_forward.38} parent=0 // pred_region
    _
  $region29: #{mrfb_forward.38} parent=0 // pred_fallthru
    _
  %v28 = vld [vmem:[%s0] sm:$0xff]
  %v29 = vld [vmem:[%s0 + $0x8] sm:$0xff]
  %v30 = vld [vmem:[%s0 + $0x10] sm:$0xff]
  %v31 = vld [vmem:[%s0 + $0x18] sm:$0xff]
  %v32 = vld [vmem:[%s0 + $0x20] sm:$0xff]
  %v33 = vld [vmem:[%s0 + $0x28] sm:$0xff]
  %v34 = vld [vmem:[%s0 + $0x30] sm:$0xff]
  %v35 = vld [vmem:[%s0 + $0x38] sm:$0xff]
  %v36 = vld [vmem:[%s0 + $0x40] sm:$0xff]
  %v37 = vld [vmem:[%s0 + $0x48] sm:$0xff]
  %v38 = vld [vmem:[%s0 + $0x50] sm:$0xff]
  %v39 = vld [vmem:[%s0 + $0x58] sm:$0xff]
  %v40 = vld [vmem:[%s0 + $0x60] sm:$0xff]
  %v41 = vld [vmem:[%s0 + $0x68] sm:$0xff]
  %v42 = vld [vmem:[%s0 + $0x70] sm:$0xff]
  %v43 = vld [vmem:[%s0 + $0x78] sm:$0xff]
  %v44 = vld [vmem:[%s0 + $0x80] sm:$0xff]
  %v45 = vld [vmem:[%s0 + $0x88] sm:$0xff]
  %v46 = vld [vmem:[%s0 + $0x90] sm:$0xff]
  %v47 = vld [vmem:[%s0 + $0x98] sm:$0xff]
  %v48 = vld [vmem:[%s0 + $0xa0] sm:$0xff]
  %v49 = vld [vmem:[%s0 + $0xa8] sm:$0xff]
  %v50 = vld [vmem:[%s0 + $0xb0] sm:$0xff]
  %v51 = vld [vmem:[%s0 + $0xb8] sm:$0xff]
  %v52 = vld [vmem:[%s0 + $0xc0] sm:$0xff]
  %v53 = vld [vmem:[%s0 + $0xc8] sm:$0xff]
  %v54 = vld [vmem:[%s0 + $0xd0] sm:$0xff]
  %v55 = vld [vmem:[%s0 + $0xd8] sm:$0xff]
  %v56 = vld [vmem:[%s0 + $0xe0] sm:$0xff]
  %v57 = vld [vmem:[%s0 + $0xe8] sm:$0xff]
  %v58 = vld [vmem:[%s0 + $0xf0] sm:$0xff]
  %v59 = vld [vmem:[%s0 + $0xf8] sm:$0xff]
  %v60 = vld [vmem:[%s6] sm:$0xff]
  %v61 = vld [vmem:[%s6 + $0x8] sm:$0xff]
  %v62 = vld [vmem:[%s1] sm:$0xff]
  %v63 = vld [vmem:[%s1 + $0x8] sm:$0xff]
  %v64 = vld [vmem:[%s1 + $0x10] sm:$0xff]
  %v65 = vld [vmem:[%s1 + $0x18] sm:$0xff]
  %v66 = vld [vmem:[%s1 + $0x20] sm:$0xff]
  %v67 = vld [vmem:[%s1 + $0x28] sm:$0xff]
  %v68 = vld [vmem:[%s1 + $0x30] sm:$0xff]
  %v69 = vld [vmem:[%s1 + $0x38] sm:$0xff]
  %v70 = vld [vmem:[%s1 + $0x40] sm:$0xff]
  %v71 = vld [vmem:[%s1 + $0x48] sm:$0xff]
  %v72 = vld [vmem:[%s1 + $0x50] sm:$0xff]
  %v73 = vld [vmem:[%s1 + $0x58] sm:$0xff]
  %v74 = vld [vmem:[%s1 + $0x60] sm:$0xff]
  %v75 = vld [vmem:[%s1 + $0x68] sm:$0xff]
  %v76 = vld [vmem:[%s1 + $0x70] sm:$0xff]
  %v77 = vld [vmem:[%s1 + $0x78] sm:$0xff]
  %v78 = vld [vmem:[%s1 + $0x80] sm:$0xff]
  %v79 = vld [vmem:[%s1 + $0x88] sm:$0xff]
  %v80 = vld [vmem:[%s1 + $0x90] sm:$0xff]
  %v81 = vld [vmem:[%s1 + $0x98] sm:$0xff]
  %v82 = vld [vmem:[%s1 + $0xa0] sm:$0xff]
  %v83 = vld [vmem:[%s1 + $0xa8] sm:$0xff]
  %v84 = vld [vmem:[%s1 + $0xb0] sm:$0xff]
  %v85 = vld [vmem:[%s1 + $0xb8] sm:$0xff]
  %v86 = vld [vmem:[%s1 + $0xc0] sm:$0xff]
  %v87 = vld [vmem:[%s1 + $0xc8] sm:$0xff]
  %v88 = vld [vmem:[%s1 + $0xd0] sm:$0xff]
  %v89 = vld [vmem:[%s1 + $0xd8] sm:$0xff]
  %v90 = vld [vmem:[%s1 + $0xe0] sm:$0xff]
  %v91 = vld [vmem:[%s1 + $0xe8] sm:$0xff]
  %v92 = vld [vmem:[%s1 + $0xf0] sm:$0xff]
  %v93 = vld [vmem:[%s1 + $0xf8] sm:$0xff]
  %95 = vset.pattern.permute.xlu0 0
  %96 = vperm.xlu0 %95, %v62
  %v97 = vpop.permute.xlu0 %96
  %100 = vset.pattern.permute.xlu0 0
  %101 = vperm.xlu0 %100, %v63
  %v102 = vpop.permute.xlu0 %101
  %105 = vset.pattern.permute.xlu0 0
  %106 = vperm.xlu0 %105, %v64
  %v107 = vpop.permute.xlu0 %106
  %110 = vset.pattern.permute.xlu0 0
  %111 = vperm.xlu0 %110, %v65
  %v112 = vpop.permute.xlu0 %111
  %115 = vset.pattern.permute.xlu0 0
  %116 = vperm.xlu0 %115, %v66
  %v117 = vpop.permute.xlu0 %116
  %120 = vset.pattern.permute.xlu0 0
  %121 = vperm.xlu0 %120, %v67
  %v122 = vpop.permute.xlu0 %121
  %125 = vset.pattern.permute.xlu0 0
  %126 = vperm.xlu0 %125, %v68
  %v127 = vpop.permute.xlu0 %126
  %130 = vset.pattern.permute.xlu0 0
  %131 = vperm.xlu0 %130, %v69
  %v132 = vpop.permute.xlu0 %131
  %135 = vset.pattern.permute.xlu0 0
  %136 = vperm.xlu0 %135, %v70
  %v137 = vpop.permute.xlu0 %136
  %140 = vset.pattern.permute.xlu0 0
  %141 = vperm.xlu0 %140, %v71
  %v142 = vpop.permute.xlu0 %141
  %145 = vset.pattern.permute.xlu0 0
  %146 = vperm.xlu0 %145, %v72
  %v147 = vpop.permute.xlu0 %146
  %150 = vset.pattern.permute.xlu0 0
  %151 = vperm.xlu0 %150, %v73
  %v152 = vpop.permute.xlu0 %151
  %155 = vset.pattern.permute.xlu0 0
  %156 = vperm.xlu0 %155, %v74
  %v157 = vpop.permute.xlu0 %156
  %160 = vset.pattern.permute.xlu0 0
  %161 = vperm.xlu0 %160, %v75
  %v162 = vpop.permute.xlu0 %161
  %165 = vset.pattern.permute.xlu0 0
  %166 = vperm.xlu0 %165, %v76
  %v167 = vpop.permute.xlu0 %166
  %170 = vset.pattern.permute.xlu0 0
  %171 = vperm.xlu0 %170, %v77
  %v172 = vpop.permute.xlu0 %171
  %175 = vset.pattern.permute.xlu0 0
  %176 = vperm.xlu0 %175, %v78
  %v177 = vpop.permute.xlu0 %176
  %180 = vset.pattern.permute.xlu0 0
  %181 = vperm.xlu0 %180, %v79
  %v182 = vpop.permute.xlu0 %181
  %185 = vset.pattern.permute.xlu0 0
  %186 = vperm.xlu0 %185, %v80
  %v187 = vpop.permute.xlu0 %186
  %190 = vset.pattern.permute.xlu0 0
  %191 = vperm.xlu0 %190, %v81
  %v192 = vpop.permute.xlu0 %191
  %195 = vset.pattern.permute.xlu0 0
  %196 = vperm.xlu0 %195, %v82
  %v197 = vpop.permute.xlu0 %196
  %200 = vset.pattern.permute.xlu0 0
  %201 = vperm.xlu0 %200, %v83
  %v202 = vpop.permute.xlu0 %201
  %205 = vset.pattern.permute.xlu0 0
  %206 = vperm.xlu0 %205, %v84
  %v207 = vpop.permute.xlu0 %206
  %210 = vset.pattern.permute.xlu0 0
  %211 = vperm.xlu0 %210, %v85
  %v212 = vpop.permute.xlu0 %211
  %215 = vset.pattern.permute.xlu0 0
  %216 = vperm.xlu0 %215, %v86
  %v217 = vpop.permute.xlu0 %216
  %220 = vset.pattern.permute.xlu0 0
  %221 = vperm.xlu0 %220, %v87
  %v222 = vpop.permute.xlu0 %221
  %225 = vset.pattern.permute.xlu0 0
  %226 = vperm.xlu0 %225, %v88
  %v227 = vpop.permute.xlu0 %226
  %230 = vset.pattern.permute.xlu0 0
  %231 = vperm.xlu0 %230, %v89
  %v232 = vpop.permute.xlu0 %231
  %235 = vset.pattern.permute.xlu0 0
  %236 = vperm.xlu0 %235, %v90
  %v237 = vpop.permute.xlu0 %236
  %240 = vset.pattern.permute.xlu0 0
  %241 = vperm.xlu0 %240, %v91
  %v242 = vpop.permute.xlu0 %241
  %245 = vset.pattern.permute.xlu0 0
  %246 = vperm.xlu0 %245, %v92
  %v247 = vpop.permute.xlu0 %246
  %250 = vset.pattern.permute.xlu0 0
  %251 = vperm.xlu0 %250, %v93
  %v252 = vpop.permute.xlu0 %251
  %vm254 = vcmask 130048
  %v256 = vsel %vm254, %v28, 0
  %v259 = vsel %vm254, %v29, 0
  %v262 = vsel %vm254, %v30, 0
  %v265 = vsel %vm254, %v31, 0
  %v268 = vsel %vm254, %v32, 0
  %v271 = vsel %vm254, %v33, 0
  %v274 = vsel %vm254, %v34, 0
  %v277 = vsel %vm254, %v35, 0
  %v280 = vsel %vm254, %v36, 0
  %v283 = vsel %vm254, %v37, 0
  %v286 = vsel %vm254, %v38, 0
  %v289 = vsel %vm254, %v39, 0
  %v292 = vsel %vm254, %v40, 0
  %v295 = vsel %vm254, %v41, 0
  %v298 = vsel %vm254, %v42, 0
  %v301 = vsel %vm254, %v43, 0
  %v304 = vsel %vm254, %v44, 0
  %v307 = vsel %vm254, %v45, 0
  %v310 = vsel %vm254, %v46, 0
  %v313 = vsel %vm254, %v47, 0
  %v316 = vsel %vm254, %v48, 0
  %v319 = vsel %vm254, %v49, 0
  %v322 = vsel %vm254, %v50, 0
  %v325 = vsel %vm254, %v51, 0
  %v328 = vsel %vm254, %v52, 0
  %v331 = vsel %vm254, %v53, 0
  %v334 = vsel %vm254, %v54, 0
  %v337 = vsel %vm254, %v55, 0
  %v340 = vsel %vm254, %v56, 0
  %v343 = vsel %vm254, %v57, 0
  %v346 = vsel %vm254, %v58, 0
  %v349 = vsel %vm254, %v59, 0
  %351 = vmatprep.subr.mxu0 0.0
  %352 = vmatpush1.msra.mxu0 %v60
  %353 = vmatprep.subr.mxu0 0.0
  %354 = vmatpush1.msra.mxu0 %v61
  %355 = vmatprep.subr.mxu0 0.0
  %356 = vmatpush1.msra.mxu0 0.0
  %357 = vmatprep.subr.mxu0 0.0
  %358 = vmatpush1.msra.mxu0 0.0
  %359 = vmatprep.subr.mxu0 0.0
  %360 = vmatpush1.msra.mxu0 0.0
  %361 = vmatprep.subr.mxu0 0.0
  %362 = vmatpush1.msra.mxu0 0.0
  %363 = vmatprep.subr.mxu0 0.0
  %364 = vmatpush1.msra.mxu0 0.0
  %365 = vmatprep.subr.mxu0 0.0
  %366 = vmatpush1.msra.mxu0 0.0
  %367 = vmatprep.subr.mxu0 0.0
  %368 = vmatpush1.msra.mxu0 0.0
  %369 = vmatprep.subr.mxu0 0.0
  %370 = vmatpush1.msra.mxu0 0.0
  %371 = vmatprep.subr.mxu0 0.0
  %372 = vmatpush1.msra.mxu0 0.0
  %373 = vmatprep.subr.mxu0 0.0
  %374 = vmatpush1.msra.mxu0 0.0
  %375 = vmatprep.subr.mxu0 0.0
  %376 = vmatpush1.msra.mxu0 0.0
  %377 = vmatprep.subr.mxu0 0.0
  %378 = vmatpush1.msra.mxu0 0.0
  %379 = vmatprep.subr.mxu0 0.0
  %380 = vmatpush1.msra.mxu0 0.0
  %381 = vmatprep.subr.mxu0 0.0
  %382 = vmatpush1.msra.mxu0 0.0
  %383 = vmatprep.subr.mxu0 0.0
  %384 = vmatpush1.msra.mxu0 0.0
  %385 = vmatprep.subr.mxu0 0.0
  %386 = vmatpush1.msra.mxu0 0.0
  %387 = vmatprep.subr.mxu0 0.0
  %388 = vmatpush1.msra.mxu0 0.0
  %389 = vmatprep.subr.mxu0 0.0
  %390 = vmatpush1.msra.mxu0 0.0
  %391 = vmatprep.subr.mxu0 0.0
  %392 = vmatpush1.msra.mxu0 0.0
  %393 = vmatprep.subr.mxu0 0.0
  %394 = vmatpush1.msra.mxu0 0.0
  %395 = vmatprep.subr.mxu0 0.0
  %396 = vmatpush1.msra.mxu0 0.0
  %397 = vmatprep.subr.mxu0 0.0
  %398 = vmatpush1.msra.mxu0 0.0
  %399 = vmatprep.subr.mxu0 0.0
  %400 = vmatpush1.msra.mxu0 0.0
  %401 = vmatprep.subr.mxu0 0.0
  %402 = vmatpush1.msra.mxu0 0.0
  %403 = vmatprep.subr.mxu0 0.0
  %404 = vmatpush1.msra.mxu0 0.0
  %405 = vmatprep.subr.mxu0 0.0
  %406 = vmatpush1.msra.mxu0 0.0
  %407 = vmatprep.subr.mxu0 0.0
  %408 = vmatpush1.msra.mxu0 0.0
  %409 = vmatprep.subr.mxu0 0.0
  %410 = vmatpush1.msra.mxu0 0.0
  %411 = vmatprep.subr.mxu0 0.0
  %412 = vmatpush1.msra.mxu0 0.0
  %413 = vmatprep.subr.mxu0 0.0
  %414 = vmatpush1.msra.mxu0 0.0
  %415 = vmatprep.mubr.f32.mxu0 0.0
  %416 = vmatmul.mubr.f32.gmra.mrb[0].mxu0 %v256
  %v417 = vpop.f32.mrb[0].mxu0
  %v418 = vadd.f32 %v97, %v417
  %v419 = vpop.f32.mrb[0].mxu0
  %420 = vmatprep.mubr.f32.mxu0 0.0
  %421 = vmatmul.mubr.f32.gmra.mrb[0].mxu0 %v259
  %v422 = vpop.f32.mrb[0].mxu0
  %v423 = vadd.f32 %v102, %v422
  %v424 = vpop.f32.mrb[0].mxu0
  %425 = vmatprep.mubr.f32.mxu0 0.0
  %426 = vmatmul.mubr.f32.gmra.mrb[0].mxu0 %v262
  %v427 = vpop.f32.mrb[0].mxu0
  %v428 = vadd.f32 %v107, %v427
  %v429 = vpop.f32.mrb[0].mxu0
  %430 = vmatprep.mubr.f32.mxu0 0.0
  %431 = vmatmul.mubr.f32.gmra.mrb[0].mxu0 %v265
  %v432 = vpop.f32.mrb[0].mxu0
  %v433 = vadd.f32 %v112, %v432
  %v434 = vpop.f32.mrb[0].mxu0
  %435 = vmatprep.mubr.f32.mxu0 0.0
  %436 = vmatmul.mubr.f32.gmra.mrb[0].mxu0 %v268
  %v437 = vpop.f32.mrb[0].mxu0
  %v438 = vadd.f32 %v117, %v437
  %v439 = vpop.f32.mrb[0].mxu0
  %440 = vmatprep.mubr.f32.mxu0 0.0
  %441 = vmatmul.mubr.f32.gmra.mrb[0].mxu0 %v271
  %v442 = vpop.f32.mrb[0].mxu0
  %v443 = vadd.f32 %v122, %v442
  %v444 = vpop.f32.mrb[0].mxu0
  %445 = vmatprep.mubr.f32.mxu0 0.0
  %446 = vmatmul.mubr.f32.gmra.mrb[0].mxu0 %v274
  %v447 = vpop.f32.mrb[0].mxu0
  %v448 = vadd.f32 %v127, %v447
  %v449 = vpop.f32.mrb[0].mxu0
  %450 = vmatprep.mubr.f32.mxu0 0.0
  %451 = vmatmul.mubr.f32.gmra.mrb[0].mxu0 %v277
  %v452 = vpop.f32.mrb[0].mxu0
  %v453 = vadd.f32 %v132, %v452
  %v454 = vpop.f32.mrb[0].mxu0
  %455 = vmatprep.mubr.f32.mxu0 0.0
  %456 = vmatmul.mubr.f32.gmra.mrb[0].mxu0 %v280
  %v457 = vpop.f32.mrb[0].mxu0
  %v458 = vadd.f32 %v137, %v457
  %v459 = vpop.f32.mrb[0].mxu0
  %460 = vmatprep.mubr.f32.mxu0 0.0
  %461 = vmatmul.mubr.f32.gmra.mrb[0].mxu0 %v283
  %v462 = vpop.f32.mrb[0].mxu0
  %v463 = vadd.f32 %v142, %v462
  %v464 = vpop.f32.mrb[0].mxu0
  %465 = vmatprep.mubr.f32.mxu0 0.0
  %466 = vmatmul.mubr.f32.gmra.mrb[0].mxu0 %v286
  %v467 = vpop.f32.mrb[0].mxu0
  %v468 = vadd.f32 %v147, %v467
  %v469 = vpop.f32.mrb[0].mxu0
  %470 = vmatprep.mubr.f32.mxu0 0.0
  %471 = vmatmul.mubr.f32.gmra.mrb[0].mxu0 %v289
  %v472 = vpop.f32.mrb[0].mxu0
  %v473 = vadd.f32 %v152, %v472
  %v474 = vpop.f32.mrb[0].mxu0
  %475 = vmatprep.mubr.f32.mxu0 0.0
  %476 = vmatmul.mubr.f32.gmra.mrb[0].mxu0 %v292
  %v477 = vpop.f32.mrb[0].mxu0
  %v478 = vadd.f32 %v157, %v477
  %v479 = vpop.f32.mrb[0].mxu0
  %480 = vmatprep.mubr.f32.mxu0 0.0
  %481 = vmatmul.mubr.f32.gmra.mrb[0].mxu0 %v295
  %v482 = vpop.f32.mrb[0].mxu0
  %v483 = vadd.f32 %v162, %v482
  %v484 = vpop.f32.mrb[0].mxu0
  %485 = vmatprep.mubr.f32.mxu0 0.0
  %486 = vmatmul.mubr.f32.gmra.mrb[0].mxu0 %v298
  %v487 = vpop.f32.mrb[0].mxu0
  %v488 = vadd.f32 %v167, %v487
  %v489 = vpop.f32.mrb[0].mxu0
  %490 = vmatprep.mubr.f32.mxu0 0.0
  %491 = vmatmul.mubr.f32.gmra.mrb[0].mxu0 %v301
  %v492 = vpop.f32.mrb[0].mxu0
  %v493 = vadd.f32 %v172, %v492
  %v494 = vpop.f32.mrb[0].mxu0
  %495 = vmatprep.mubr.f32.mxu0 0.0
  %496 = vmatmul.mubr.f32.gmra.mrb[0].mxu0 %v304
  %v497 = vpop.f32.mrb[0].mxu0
  %v498 = vadd.f32 %v177, %v497
  %v499 = vpop.f32.mrb[0].mxu0
  %500 = vmatprep.mubr.f32.mxu0 0.0
  %501 = vmatmul.mubr.f32.gmra.mrb[0].mxu0 %v307
  %v502 = vpop.f32.mrb[0].mxu0
  %v503 = vadd.f32 %v182, %v502
  %v504 = vpop.f32.mrb[0].mxu0
  %505 = vmatprep.mubr.f32.mxu0 0.0
  %506 = vmatmul.mubr.f32.gmra.mrb[0].mxu0 %v310
  %v507 = vpop.f32.mrb[0].mxu0
  %v508 = vadd.f32 %v187, %v507
  %v509 = vpop.f32.mrb[0].mxu0
  %510 = vmatprep.mubr.f32.mxu0 0.0
  %511 = vmatmul.mubr.f32.gmra.mrb[0].mxu0 %v313
  %v512 = vpop.f32.mrb[0].mxu0
  %v513 = vadd.f32 %v192, %v512
  %v514 = vpop.f32.mrb[0].mxu0
  %515 = vmatprep.mubr.f32.mxu0 0.0
  %516 = vmatmul.mubr.f32.gmra.mrb[0].mxu0 %v316
  %v517 = vpop.f32.mrb[0].mxu0
  %v518 = vadd.f32 %v197, %v517
  %v519 = vpop.f32.mrb[0].mxu0
  %520 = vmatprep.mubr.f32.mxu0 0.0
  %521 = vmatmul.mubr.f32.gmra.mrb[0].mxu0 %v319
  %v522 = vpop.f32.mrb[0].mxu0
  %v523 = vadd.f32 %v202, %v522
  %v524 = vpop.f32.mrb[0].mxu0
  %525 = vmatprep.mubr.f32.mxu0 0.0
  %526 = vmatmul.mubr.f32.gmra.mrb[0].mxu0 %v322
  %v527 = vpop.f32.mrb[0].mxu0
  %v528 = vadd.f32 %v207, %v527
  %v529 = vpop.f32.mrb[0].mxu0
  %530 = vmatprep.mubr.f32.mxu0 0.0
  %531 = vmatmul.mubr.f32.gmra.mrb[0].mxu0 %v325
  %v532 = vpop.f32.mrb[0].mxu0
  %v533 = vadd.f32 %v212, %v532
  %v534 = vpop.f32.mrb[0].mxu0
  %535 = vmatprep.mubr.f32.mxu0 0.0
  %536 = vmatmul.mubr.f32.gmra.mrb[0].mxu0 %v328
  %v537 = vpop.f32.mrb[0].mxu0
  %v538 = vadd.f32 %v217, %v537
  %v539 = vpop.f32.mrb[0].mxu0
  %540 = vmatprep.mubr.f32.mxu0 0.0
  %541 = vmatmul.mubr.f32.gmra.mrb[0].mxu0 %v331
  %v542 = vpop.f32.mrb[0].mxu0
  %v543 = vadd.f32 %v222, %v542
  %v544 = vpop.f32.mrb[0].mxu0
  %545 = vmatprep.mubr.f32.mxu0 0.0
  %546 = vmatmul.mubr.f32.gmra.mrb[0].mxu0 %v334
  %v547 = vpop.f32.mrb[0].mxu0
  %v548 = vadd.f32 %v227, %v547
  %v549 = vpop.f32.mrb[0].mxu0
  %550 = vmatprep.mubr.f32.mxu0 0.0
  %551 = vmatmul.mubr.f32.gmra.mrb[0].mxu0 %v337
  %v552 = vpop.f32.mrb[0].mxu0
  %v553 = vadd.f32 %v232, %v552
  %v554 = vpop.f32.mrb[0].mxu0
  %555 = vmatprep.mubr.f32.mxu0 0.0
  %556 = vmatmul.mubr.f32.gmra.mrb[0].mxu0 %v340
  %v557 = vpop.f32.mrb[0].mxu0
  %v558 = vadd.f32 %v237, %v557
  %v559 = vpop.f32.mrb[0].mxu0
  %560 = vmatprep.mubr.f32.mxu0 0.0
  %561 = vmatmul.mubr.f32.gmra.mrb[0].mxu0 %v343
  %v562 = vpop.f32.mrb[0].mxu0
  %v563 = vadd.f32 %v242, %v562
  %v564 = vpop.f32.mrb[0].mxu0
  %565 = vmatprep.mubr.f32.mxu0 0.0
  %566 = vmatmul.mubr.f32.gmra.mrb[0].mxu0 %v346
  %v567 = vpop.f32.mrb[0].mxu0
  %v568 = vadd.f32 %v247, %v567
  %v569 = vpop.f32.mrb[0].mxu0
  %570 = vmatprep.mubr.f32.mxu0 0.0
  %571 = vmatmul.mubr.f32.gmra.mrb[0].mxu0 %v349
  %v572 = vpop.f32.mrb[0].mxu0
  %v573 = vadd.f32 %v252, %v572
  %v574 = vpop.f32.mrb[0].mxu0
  %575 = vdwg.mxu0
  %v576 = vmax.f32 %v418, 0.0
  %v577 = vmax.f32 %v423, 0.0
  %v578 = vmax.f32 %v428, 0.0
  %v579 = vmax.f32 %v433, 0.0
  %v580 = vmax.f32 %v438, 0.0
  %v581 = vmax.f32 %v443, 0.0
  %v582 = vmax.f32 %v448, 0.0
  %v583 = vmax.f32 %v453, 0.0
  %v584 = vmax.f32 %v458, 0.0
  %v585 = vmax.f32 %v463, 0.0
  %v586 = vmax.f32 %v468, 0.0
  %v587 = vmax.f32 %v473, 0.0
  %v588 = vmax.f32 %v478, 0.0
  %v589 = vmax.f32 %v483, 0.0
  %v590 = vmax.f32 %v488, 0.0
  %v591 = vmax.f32 %v493, 0.0
  %v592 = vmax.f32 %v498, 0.0
  %v593 = vmax.f32 %v503, 0.0
  %v594 = vmax.f32 %v508, 0.0
  %v595 = vmax.f32 %v513, 0.0
  %v596 = vmax.f32 %v518, 0.0
  %v597 = vmax.f32 %v523, 0.0
  %v598 = vmax.f32 %v528, 0.0
  %v599 = vmax.f32 %v533, 0.0
  %v600 = vmax.f32 %v538, 0.0
  %v601 = vmax.f32 %v543, 0.0
  %v602 = vmax.f32 %v548, 0.0
  %v603 = vmax.f32 %v553, 0.0
  %v604 = vmax.f32 %v558, 0.0
  %v605 = vmax.f32 %v563, 0.0
  %v606 = vmax.f32 %v568, 0.0
  %v607 = vmax.f32 %v573, 0.0
  %v608 = vld [vmem:[%s2] sm:$0xff]
  %v609 = vld [vmem:[%s2 + $0x8] sm:$0xff]
  %v610 = vld [vmem:[%s2 + $0x10] sm:$0xff]
  %v611 = vld [vmem:[%s2 + $0x18] sm:$0xff]
  %v612 = vld [vmem:[%s3] sm:$0xff]
  %v613 = vld [vmem:[%s3 + $0x8] sm:$0xff]
  %615 = vset.pattern.permute.xlu0 0
  %616 = vperm.xlu0 %615, %v612
  %v617 = vpop.permute.xlu0 %616
  %620 = vset.pattern.permute.xlu0 0
  %621 = vperm.xlu0 %620, %v613
  %v622 = vpop.permute.xlu0 %621
  %624 = vmatprep.subr.mxu0 0.0
  %625 = vmatpush1.msra.mxu0 %v576
  %626 = vmatprep.subr.mxu0 0.0
  %627 = vmatpush1.msra.mxu0 %v577
  %628 = vmatprep.subr.mxu0 0.0
  %629 = vmatpush1.msra.mxu0 %v578
  %630 = vmatprep.subr.mxu0 0.0
  %631 = vmatpush1.msra.mxu0 %v579
  %632 = vmatprep.subr.mxu0 0.0
  %633 = vmatpush1.msra.mxu0 %v580
  %634 = vmatprep.subr.mxu0 0.0
  %635 = vmatpush1.msra.mxu0 %v581
  %636 = vmatprep.subr.mxu0 0.0
  %637 = vmatpush1.msra.mxu0 %v582
  %638 = vmatprep.subr.mxu0 0.0
  %639 = vmatpush1.msra.mxu0 %v583
  %640 = vmatprep.subr.mxu0 0.0
  %641 = vmatpush1.msra.mxu0 %v584
  %642 = vmatprep.subr.mxu0 0.0
  %643 = vmatpush1.msra.mxu0 %v585
  %644 = vmatprep.subr.mxu0 0.0
  %645 = vmatpush1.msra.mxu0 %v586
  %646 = vmatprep.subr.mxu0 0.0
  %647 = vmatpush1.msra.mxu0 %v587
  %648 = vmatprep.subr.mxu0 0.0
  %649 = vmatpush1.msra.mxu0 %v588
  %650 = vmatprep.subr.mxu0 0.0
  %651 = vmatpush1.msra.mxu0 %v589
  %652 = vmatprep.subr.mxu0 0.0
  %653 = vmatpush1.msra.mxu0 %v590
  %654 = vmatprep.subr.mxu0 0.0
  %655 = vmatpush1.msra.mxu0 %v591
  %656 = vmatprep.subr.mxu0 0.0
  %657 = vmatpush1.msra.mxu0 %v592
  %658 = vmatprep.subr.mxu0 0.0
  %659 = vmatpush1.msra.mxu0 %v593
  %660 = vmatprep.subr.mxu0 0.0
  %661 = vmatpush1.msra.mxu0 %v594
  %662 = vmatprep.subr.mxu0 0.0
  %663 = vmatpush1.msra.mxu0 %v595
  %664 = vmatprep.subr.mxu0 0.0
  %665 = vmatpush1.msra.mxu0 %v596
  %666 = vmatprep.subr.mxu0 0.0
  %667 = vmatpush1.msra.mxu0 %v597
  %668 = vmatprep.subr.mxu0 0.0
  %669 = vmatpush1.msra.mxu0 %v598
  %670 = vmatprep.subr.mxu0 0.0
  %671 = vmatpush1.msra.mxu0 %v599
  %672 = vmatprep.subr.mxu0 0.0
  %673 = vmatpush1.msra.mxu0 %v600
  %674 = vmatprep.subr.mxu0 0.0
  %675 = vmatpush1.msra.mxu0 %v601
  %676 = vmatprep.subr.mxu0 0.0
  %677 = vmatpush1.msra.mxu0 %v602
  %678 = vmatprep.subr.mxu0 0.0
  %679 = vmatpush1.msra.mxu0 %v603
  %680 = vmatprep.subr.mxu0 0.0
  %681 = vmatpush1.msra.mxu0 %v604
  %682 = vmatprep.subr.mxu0 0.0
  %683 = vmatpush1.msra.mxu0 %v605
  %684 = vmatprep.subr.mxu0 0.0
  %685 = vmatpush1.msra.mxu0 %v606
  %686 = vmatprep.subr.mxu0 0.0
  %687 = vmatpush1.msra.mxu0 %v607
  %688 = vmatprep.mubr.f32.mxu0 %v609
  %689 = vmatmul.mubr.f32.gmra.mrb[0].mxu0 %v608
  %v690 = vpop.f32.mrb[0].mxu0
  %v691 = vadd.f32 %v617, %v690
  %v692 = vpop.f32.mrb[0].mxu0
  %693 = vmatprep.mubr.f32.mxu0 %v611
  %694 = vmatmul.mubr.f32.gmra.mrb[0].mxu0 %v610
  %v695 = vpop.f32.mrb[0].mxu0
  %v696 = vadd.f32 %v622, %v695
  %v697 = vpop.f32.mrb[0].mxu0
  %698 = vdwg.mxu0
  %699 = vst [vmem:[%s7] sm:$0xff] %v691
  %700 = vst [vmem:[%s7 + $0x8] sm:$0xff] %v696
  %v701 = vld [vmem:[%s4] sm:$0xff]
  %v703 = vsel %vm254, %v701, 0
  %705 = vmatprep.subr.mxu0 0.0
  %706 = vmatpush1.msra.mxu0 %v691
  %707 = vmatprep.subr.mxu0 0.0
  %708 = vmatpush1.msra.mxu0 %v696
  %709 = vmatprep.subr.mxu0 0.0
  %710 = vmatpush1.msra.mxu0 0.0
  %711 = vmatprep.subr.mxu0 0.0
  %712 = vmatpush1.msra.mxu0 0.0
  %713 = vmatprep.subr.mxu0 0.0
  %714 = vmatpush1.msra.mxu0 0.0
  %715 = vmatprep.subr.mxu0 0.0
  %716 = vmatpush1.msra.mxu0 0.0
  %717 = vmatprep.subr.mxu0 0.0
  %718 = vmatpush1.msra.mxu0 0.0
  %719 = vmatprep.subr.mxu0 0.0
  %720 = vmatpush1.msra.mxu0 0.0
  %721 = vmatprep.subr.mxu0 0.0
  %722 = vmatpush1.msra.mxu0 0.0
  %723 = vmatprep.subr.mxu0 0.0
  %724 = vmatpush1.msra.mxu0 0.0
  %725 = vmatprep.subr.mxu0 0.0
  %726 = vmatpush1.msra.mxu0 0.0
  %727 = vmatprep.subr.mxu0 0.0
  %728 = vmatpush1.msra.mxu0 0.0
  %729 = vmatprep.subr.mxu0 0.0
  %730 = vmatpush1.msra.mxu0 0.0
  %731 = vmatprep.subr.mxu0 0.0
  %732 = vmatpush1.msra.mxu0 0.0
  %733 = vmatprep.subr.mxu0 0.0
  %734 = vmatpush1.msra.mxu0 0.0
  %735 = vmatprep.subr.mxu0 0.0
  %736 = vmatpush1.msra.mxu0 0.0
  %737 = vmatprep.subr.mxu0 0.0
  %738 = vmatpush1.msra.mxu0 0.0
  %739 = vmatprep.subr.mxu0 0.0
  %740 = vmatpush1.msra.mxu0 0.0
  %741 = vmatprep.subr.mxu0 0.0
  %742 = vmatpush1.msra.mxu0 0.0
  %743 = vmatprep.subr.mxu0 0.0
  %744 = vmatpush1.msra.mxu0 0.0
  %745 = vmatprep.subr.mxu0 0.0
  %746 = vmatpush1.msra.mxu0 0.0
  %747 = vmatprep.subr.mxu0 0.0
  %748 = vmatpush1.msra.mxu0 0.0
  %749 = vmatprep.subr.mxu0 0.0
  %750 = vmatpush1.msra.mxu0 0.0
  %751 = vmatprep.subr.mxu0 0.0
  %752 = vmatpush1.msra.mxu0 0.0
  %753 = vmatprep.subr.mxu0 0.0
  %754 = vmatpush1.msra.mxu0 0.0
  %755 = vmatprep.subr.mxu0 0.0
  %756 = vmatpush1.msra.mxu0 0.0
  %757 = vmatprep.subr.mxu0 0.0
  %758 = vmatpush1.msra.mxu0 0.0
  %759 = vmatprep.subr.mxu0 0.0
  %760 = vmatpush1.msra.mxu0 0.0
  %761 = vmatprep.subr.mxu0 0.0
  %762 = vmatpush1.msra.mxu0 0.0
  %763 = vmatprep.subr.mxu0 0.0
  %764 = vmatpush1.msra.mxu0 0.0
  %765 = vmatprep.subr.mxu0 0.0
  %766 = vmatpush1.msra.mxu0 0.0
  %767 = vmatprep.subr.mxu0 0.0
  %768 = vmatpush1.msra.mxu0 0.0
  %769 = vmatprep.mubr.f32.mxu0 0.0
  %770 = vmatmul.mubr.f32.gmra.mrb[0].mxu0 %v703
  %v771 = vpop.f32.mrb[0].mxu0
  %v772 = vadd.f32 0.0, %v771
  %v773 = vpop.f32.mrb[0].mxu0
  %774 = vdwg.mxu0
  %v775 = vmul.f32 %v691, %v691
  %v776 = vmul.f32 %v696, %v696
  %v777 = vadd.f32 %v775, %v776
  %v778 = vrot.slane %v777, 4
  %v779 = vadd.f32 %v777, %v778
  %v780 = vrot.slane %v779, 2
  %v781 = vadd.f32 %v779, %v780
  %v782 = vrot.slane %v781, 1
  %v783 = vadd.f32 %v781, %v782
  %v784 = vrsqrt.pop %v783
  %v785 = vmul.f32 %v783, %v784
  %vm786 = vcmp.eq.f32.partialorder %v783, inf
  %v787 = vsel %vm786, %v783, %v785
  %vm788 = vcmp.eq.f32.partialorder %v783, 0.0
  %v789 = vand.u32 %v783, 2147483648
  %v790 = vsel %vm788, %v789, %v787
  %v791 = vmax.f32 %v790, 1e-08
  %v792 = vrcp.pop %v791
  %v793 = vmul.f32 %v772, %v792
  %v794 = vrot.slane %v793, 4
  %v795 = vmax.f32 %v793, %v794
  %v796 = vrot.slane %v795, 2
  %v797 = vmax.f32 %v795, %v796
  %v798 = vrot.slane %v797, 1
  %v799 = vmax.f32 %v797, %v798
  %vm800 = vcmp.lt.f32.partialorder %v793, %v799
  %v801 = vsel %vm800, 0.0, %v793
  %v802 = vld [vmem:[%s5] sm:$0xff]
  %v803 = vld [vmem:[%s5 + $0x8] sm:$0xff]
  %v804 = vld [vmem:[%s5 + $0x10] sm:$0xff]
  %v805 = vld [vmem:[%s5 + $0x18] sm:$0xff]
  %v806 = vld [vmem:[%s5 + $0x20] sm:$0xff]
  %v807 = vld [vmem:[%s5 + $0x28] sm:$0xff]
  %v808 = vld [vmem:[%s5 + $0x30] sm:$0xff]
  %v809 = vld [vmem:[%s5 + $0x38] sm:$0xff]
  %vm810 = vcmask 64512
  %v812 = vsel %vm810, %v802, 0
  %v815 = vsel %vm810, %v803, 0
  %v818 = vsel %vm810, %v804, 0
  %v821 = vsel %vm810, %v805, 0
  %v824 = vsel %vm810, %v806, 0
  %v827 = vsel %vm810, %v807, 0
  %v830 = vsel %vm810, %v808, 0
  %v833 = vsel %vm810, %v809, 0
  %835 = vmatprep.subr.mxu0 0.0
  %836 = vmatpush1.msra.mxu0 %v801
  %837 = vmatprep.subr.mxu0 0.0
  %838 = vmatpush1.msra.mxu0 0.0
  %839 = vmatprep.subr.mxu0 0.0
  %840 = vmatpush1.msra.mxu0 0.0
  %841 = vmatprep.subr.mxu0 0.0
  %842 = vmatpush1.msra.mxu0 0.0
  %843 = vmatprep.subr.mxu0 0.0
  %844 = vmatpush1.msra.mxu0 0.0
  %845 = vmatprep.subr.mxu0 0.0
  %846 = vmatpush1.msra.mxu0 0.0
  %847 = vmatprep.subr.mxu0 0.0
  %848 = vmatpush1.msra.mxu0 0.0
  %849 = vmatprep.subr.mxu0 0.0
  %850 = vmatpush1.msra.mxu0 0.0
  %851 = vmatprep.subr.mxu0 0.0
  %852 = vmatpush1.msra.mxu0 0.0
  %853 = vmatprep.subr.mxu0 0.0
  %854 = vmatpush1.msra.mxu0 0.0
  %855 = vmatprep.subr.mxu0 0.0
  %856 = vmatpush1.msra.mxu0 0.0
  %857 = vmatprep.subr.mxu0 0.0
  %858 = vmatpush1.msra.mxu0 0.0
  %859 = vmatprep.subr.mxu0 0.0
  %860 = vmatpush1.msra.mxu0 0.0
  %861 = vmatprep.subr.mxu0 0.0
  %862 = vmatpush1.msra.mxu0 0.0
  %863 = vmatprep.subr.mxu0 0.0
  %864 = vmatpush1.msra.mxu0 0.0
  %865 = vmatprep.subr.mxu0 0.0
  %866 = vmatpush1.msra.mxu0 0.0
  %867 = vmatprep.subr.mxu0 0.0
  %868 = vmatpush1.msra.mxu0 0.0
  %869 = vmatprep.subr.mxu0 0.0
  %870 = vmatpush1.msra.mxu0 0.0
  %871 = vmatprep.subr.mxu0 0.0
  %872 = vmatpush1.msra.mxu0 0.0
  %873 = vmatprep.subr.mxu0 0.0
  %874 = vmatpush1.msra.mxu0 0.0
  %875 = vmatprep.subr.mxu0 0.0
  %876 = vmatpush1.msra.mxu0 0.0
  %877 = vmatprep.subr.mxu0 0.0
  %878 = vmatpush1.msra.mxu0 0.0
  %879 = vmatprep.subr.mxu0 0.0
  %880 = vmatpush1.msra.mxu0 0.0
  %881 = vmatprep.subr.mxu0 0.0
  %882 = vmatpush1.msra.mxu0 0.0
  %883 = vmatprep.subr.mxu0 0.0
  %884 = vmatpush1.msra.mxu0 0.0
  %885 = vmatprep.subr.mxu0 0.0
  %886 = vmatpush1.msra.mxu0 0.0
  %887 = vmatprep.subr.mxu0 0.0
  %888 = vmatpush1.msra.mxu0 0.0
  %889 = vmatprep.subr.mxu0 0.0
  %890 = vmatpush1.msra.mxu0 0.0
  %891 = vmatprep.subr.mxu0 0.0
  %892 = vmatpush1.msra.mxu0 0.0
  %893 = vmatprep.subr.mxu0 0.0
  %894 = vmatpush1.msra.mxu0 0.0
  %895 = vmatprep.subr.mxu0 0.0
  %896 = vmatpush1.msra.mxu0 0.0
  %897 = vmatprep.subr.mxu0 0.0
  %898 = vmatpush1.msra.mxu0 0.0
  %899 = vmatprep.mubr.f32.mxu0 0.0
  %900 = vmatmul.mubr.f32.gmra.mrb[0].mxu0 %v812
  %v901 = vpop.f32.mrb[0].mxu0
  %v902 = vadd.f32 0.0, %v901
  %v903 = vpop.f32.mrb[0].mxu0
  %904 = vmatprep.mubr.f32.mxu0 0.0
  %905 = vmatmul.mubr.f32.gmra.mrb[0].mxu0 %v815
  %v906 = vpop.f32.mrb[0].mxu0
  %v907 = vadd.f32 0.0, %v906
  %v908 = vpop.f32.mrb[0].mxu0
  %909 = vmatprep.mubr.f32.mxu0 0.0
  %910 = vmatmul.mubr.f32.gmra.mrb[0].mxu0 %v818
  %v911 = vpop.f32.mrb[0].mxu0
  %v912 = vadd.f32 0.0, %v911
  %v913 = vpop.f32.mrb[0].mxu0
  %914 = vmatprep.mubr.f32.mxu0 0.0
  %915 = vmatmul.mubr.f32.gmra.mrb[0].mxu0 %v821
  %v916 = vpop.f32.mrb[0].mxu0
  %v917 = vadd.f32 0.0, %v916
  %v918 = vpop.f32.mrb[0].mxu0
  %919 = vmatprep.mubr.f32.mxu0 0.0
  %920 = vmatmul.mubr.f32.gmra.mrb[0].mxu0 %v824
  %v921 = vpop.f32.mrb[0].mxu0
  %v922 = vadd.f32 0.0, %v921
  %v923 = vpop.f32.mrb[0].mxu0
  %924 = vmatprep.mubr.f32.mxu0 0.0
  %925 = vmatmul.mubr.f32.gmra.mrb[0].mxu0 %v827
  %v926 = vpop.f32.mrb[0].mxu0
  %v927 = vadd.f32 0.0, %v926
  %v928 = vpop.f32.mrb[0].mxu0
  %929 = vmatprep.mubr.f32.mxu0 0.0
  %930 = vmatmul.mubr.f32.gmra.mrb[0].mxu0 %v830
  %v931 = vpop.f32.mrb[0].mxu0
  %v932 = vadd.f32 0.0, %v931
  %v933 = vpop.f32.mrb[0].mxu0
  %934 = vmatprep.mubr.f32.mxu0 0.0
  %935 = vmatmul.mubr.f32.gmra.mrb[0].mxu0 %v833
  %v936 = vpop.f32.mrb[0].mxu0
  %v937 = vadd.f32 0.0, %v936
  %v938 = vpop.f32.mrb[0].mxu0
  %939 = vdwg.mxu0
  %940 = vst [vmem:[%s8] sm:$0xff] %v902
  %941 = vst [vmem:[%s8 + $0x8] sm:$0xff] %v907
  %942 = vst [vmem:[%s8 + $0x10] sm:$0xff] %v912
  %943 = vst [vmem:[%s8 + $0x18] sm:$0xff] %v917
  %944 = vst [vmem:[%s8 + $0x20] sm:$0xff] %v922
  %945 = vst [vmem:[%s8 + $0x28] sm:$0xff] %v927
  %946 = vst [vmem:[%s8 + $0x30] sm:$0xff] %v932
  %947 = vst [vmem:[%s8 + $0x38] sm:$0xff] %v937
  // Predicated region
  $region30: #{mrfb_forward.38} parent=0 // pred_check
    _
  $region31: #{mrfb_forward.38} parent=0 // pred_check_branch
    %949 = sbr.rel (0) target = $region33
  $region32: #{mrfb_forward.38} parent=0 // pred_region
    _
  $region33: #{mrfb_forward.38} parent=0 // pred_fallthru
    _
  // Predicated region
  $region34: #{mrfb_forward.38} parent=0 // pred_check
    _
  $region35: #{mrfb_forward.38} parent=0 // pred_check_branch
    %951 = sbr.rel (0) target = $region37
  $region36: #{mrfb_forward.38} parent=0 // pred_region
    _
  $region37: #{mrfb_forward.38} parent=0 // pred_fallthru
    _
  // Predicated region
  $region38: #{mrfb_forward.38} parent=0 // pred_check
    _
  $region39: #{mrfb_forward.38} parent=0 // pred_check_branch
    %953 = sbr.rel (0) target = $region41
  $region40: #{mrfb_forward.38} parent=0 // pred_region
    _
  $region41: #{mrfb_forward.38} parent=0 // pred_fallthru
    _
  // Predicated region
  $region42: #{mrfb_forward.38} parent=0 // pred_check
    _
  $region43: #{mrfb_forward.38} parent=0 // pred_check_branch
    %955 = sbr.rel (0) target = $region45
  $region44: #{mrfb_forward.38} parent=0 // pred_region
    _
  $region45: #{mrfb_forward.38} parent=0 // pred_fallthru
    _

// kernel: mrfb_forward.39
$region0: #{mrfb_forward.39}
  #allocation0 [shape = 'u32[]', space=smem, size = 0x4, offset = 0x4, fixed_abs, tag = 'smem constant byte address 0x4 - core index']
  #allocation1 [shape = 'u32[144,128]{1,0:T(1,128)}', space=vmem, size = 0x12000, scoped, tag = 'internal scratch']
  %s0 = inlined_call_operand.vmem [shape: bf16[4,8], index: 0, kind: input, shape index: {}]
  %s1 = inlined_call_operand.vmem [shape: f32[4,1], index: 1, kind: input, shape index: {}]
  %s2 = inlined_call_operand.vmem [shape: bf16[8,512], index: 2, kind: input, shape index: {}]
  %s3 = inlined_call_operand.vmem [shape: f32[4,512], index: 3, kind: output, shape index: {}]
  %s4 = sld [smem:[#allocation0]]
  $region22: #{mrfb_forward.39} parent=0
    _
  %s6 = ssub.s32 1, %s4
  %s7 = scalar_select 0, %s6, %s4
  // Predicated region
  $region2: #{mrfb_forward.39} parent=0 // pred_check
    _
  $region3: #{mrfb_forward.39} parent=0 // pred_check_branch
    %9 = sbr.rel (0) target = $region5
  $region4: #{mrfb_forward.39} parent=0 // pred_region
    _
  $region5: #{mrfb_forward.39} parent=0 // pred_fallthru
    _
  // Predicated region
  $region6: #{mrfb_forward.39} parent=0 // pred_check
    _
  $region7: #{mrfb_forward.39} parent=0 // pred_check_branch
    %11 = sbr.rel (0) target = $region9
  $region8: #{mrfb_forward.39} parent=0 // pred_region
    _
  $region9: #{mrfb_forward.39} parent=0 // pred_fallthru
    _
  // Predicated region
  $region10: #{mrfb_forward.39} parent=0 // pred_check
    _
  $region11: #{mrfb_forward.39} parent=0 // pred_check_branch
    %13 = sbr.rel (0) target = $region13
  $region12: #{mrfb_forward.39} parent=0 // pred_region
    _
  $region13: #{mrfb_forward.39} parent=0 // pred_fallthru
    _
  %v15 = vld [vmem:[%s0] sm:$0x3]
  %v16 = vld [vmem:[%s2] sm:$0xff]
  %v17 = vld [vmem:[%s2 + $0x8] sm:$0xff]
  %v18 = vld [vmem:[%s1] sm:$0xf]
  %20 = vset.pattern.permute.xlu0 0
  %21 = vperm.xlu0 %20, %v18
  %v22 = vpop.permute.xlu0 %21
  %v26 = vunpack.c.l.b16 %v16
  %v27 = vunpack.c.h.b16 %v16
  %v28 = vunpack.c.l.b16 %v17
  %v29 = vunpack.c.h.b16 %v17
  %v30 = vpack.c.b16 %v26, %v26
  %v31 = vpack.c.b16 %v27, %v27
  %v32 = vpack.c.b16 %v28, %v28
  %v33 = vpack.c.b16 %v29, %v29
  %vm34 = vcmask 64512
  %v36 = vsel %vm34, %v15, 0
  %vm38 = vcmask 1043456
  %v40 = vsel %vm38, %v30, 0
  %v43 = vsel %vm38, %v31, 0
  %v46 = vsel %vm38, %v32, 0
  %v49 = vsel %vm38, %v33, 0
  %51 = vmatprep.subr.bf16.mxu0 %v43
  %52 = vmatpush1.bf16.msra.mxu0 %v40
  %53 = vmatprep.subr.bf16.mxu0 0
  %54 = vmatpush1.bf16.msra.mxu0 0
  %55 = vmatprep.subr.bf16.mxu0 0
  %56 = vmatpush1.bf16.msra.mxu0 0
  %57 = vmatprep.subr.bf16.mxu0 0
  %58 = vmatpush1.bf16.msra.mxu0 0
  %59 = vmatprep.subr.bf16.mxu0 0
  %60 = vmatpush1.bf16.msra.mxu0 0
  %61 = vmatprep.subr.bf16.mxu0 0
  %62 = vmatpush1.bf16.msra.mxu0 0
  %63 = vmatprep.subr.bf16.mxu0 0
  %64 = vmatpush1.bf16.msra.mxu0 0
  %65 = vmatprep.subr.bf16.mxu0 0
  %66 = vmatpush1.bf16.msra.mxu0 0
  %67 = vmatprep.subr.bf16.mxu0 0
  %68 = vmatpush1.bf16.msra.mxu0 0
  %69 = vmatprep.subr.bf16.mxu0 0
  %70 = vmatpush1.bf16.msra.mxu0 0
  %71 = vmatprep.subr.bf16.mxu0 0
  %72 = vmatpush1.bf16.msra.mxu0 0
  %73 = vmatprep.subr.bf16.mxu0 0
  %74 = vmatpush1.bf16.msra.mxu0 0
  %75 = vmatprep.subr.bf16.mxu0 0
  %76 = vmatpush1.bf16.msra.mxu0 0
  %77 = vmatprep.subr.bf16.mxu0 0
  %78 = vmatpush1.bf16.msra.mxu0 0
  %79 = vmatprep.subr.bf16.mxu0 0
  %80 = vmatpush1.bf16.msra.mxu0 0
  %81 = vmatprep.subr.bf16.mxu0 0
  %82 = vmatpush1.bf16.msra.mxu0 0
  %83 = vmatprep.mubr.bf16.mxu0 0
  %84 = vmatmul.mubr.bf16.gmra.mrb[0].mxu0 %v36
  %v85 = vpop.f32.mrb[0].mxu0
  %v86 = vadd.f32 %v22, %v85
  %v87 = vpop.f32.mrb[0].mxu0
  %v88 = vadd.f32 %v22, %v87
  %v89 = vpop.f32.mrb[0].mxu0
  %v90 = vpop.f32.mrb[0].mxu0
  %91 = vdwg.mxu0
  %92 = vmatprep.subr.bf16.mxu0 %v49
  %93 = vmatpush1.bf16.msra.mxu0 %v46
  %94 = vmatprep.subr.bf16.mxu0 0
  %95 = vmatpush1.bf16.msra.mxu0 0
  %96 = vmatprep.subr.bf16.mxu0 0
  %97 = vmatpush1.bf16.msra.mxu0 0
  %98 = vmatprep.subr.bf16.mxu0 0
  %99 = vmatpush1.bf16.msra.mxu0 0
  %100 = vmatprep.subr.bf16.mxu0 0
  %101 = vmatpush1.bf16.msra.mxu0 0
  %102 = vmatprep.subr.bf16.mxu0 0
  %103 = vmatpush1.bf16.msra.mxu0 0
  %104 = vmatprep.subr.bf16.mxu0 0
  %105 = vmatpush1.bf16.msra.mxu0 0
  %106 = vmatprep.subr.bf16.mxu0 0
  %107 = vmatpush1.bf16.msra.mxu0 0
  %108 = vmatprep.subr.bf16.mxu0 0
  %109 = vmatpush1.bf16.msra.mxu0 0
  %110 = vmatprep.subr.bf16.mxu0 0
  %111 = vmatpush1.bf16.msra.mxu0 0
  %112 = vmatprep.subr.bf16.mxu0 0
  %113 = vmatpush1.bf16.msra.mxu0 0
  %114 = vmatprep.subr.bf16.mxu0 0
  %115 = vmatpush1.bf16.msra.mxu0 0
  %116 = vmatprep.subr.bf16.mxu0 0
  %117 = vmatpush1.bf16.msra.mxu0 0
  %118 = vmatprep.subr.bf16.mxu0 0
  %119 = vmatpush1.bf16.msra.mxu0 0
  %120 = vmatprep.subr.bf16.mxu0 0
  %121 = vmatpush1.bf16.msra.mxu0 0
  %122 = vmatprep.subr.bf16.mxu0 0
  %123 = vmatpush1.bf16.msra.mxu0 0
  %124 = vmatprep.mubr.bf16.mxu0 0
  %125 = vmatmul.mubr.bf16.gmra.mrb[0].mxu0 %v36
  %v126 = vpop.f32.mrb[0].mxu0
  %v127 = vadd.f32 %v22, %v126
  %v128 = vpop.f32.mrb[0].mxu0
  %v129 = vadd.f32 %v22, %v128
  %v130 = vpop.f32.mrb[0].mxu0
  %v131 = vpop.f32.mrb[0].mxu0
  %132 = vdwg.mxu0
  %v137 = vcombine.low %v86, %v88
  %v138 = vcombine.low %v127, %v129
  %141 = vst [vmem:[%s3] sm:$0xff] %v137
  %142 = vst [vmem:[%s3 + $0x8] sm:$0xff] %v138
  // Predicated region
  $region14: #{mrfb_forward.39} parent=0 // pred_check
    _
  $region15: #{mrfb_forward.39} parent=0 // pred_check_branch
    %144 = sbr.rel (0) target = $region17
  $region16: #{mrfb_forward.39} parent=0 // pred_region
    _
  $region17: #{mrfb_forward.39} parent=0 // pred_fallthru
    _
  // Predicated region
  $region18: #{mrfb_forward.39} parent=0 // pred_check
    _
  $region19: #{mrfb_forward.39} parent=0 // pred_check_branch
    %146 = sbr.rel (0) target = $region21
  $region20: #{mrfb_forward.39} parent=0 // pred_region
    _
  $region21: #{mrfb_forward.39} parent=0 // pred_fallthru
    _

// kernel: mrfb_forward.40
$region0: #{mrfb_forward.40}
  #allocation0 [shape = 'u32[]', space=smem, size = 0x4, offset = 0x4, fixed_abs, tag = 'smem constant byte address 0x4 - core index']
  #allocation1 [shape = 'u32[144,128]{1,0:T(1,128)}', space=vmem, size = 0x12000, scoped, tag = 'internal scratch']
  %s0 = inlined_call_operand.vmem [shape: bf16[4,36], index: 0, kind: input, shape index: {}]
  %s1 = inlined_call_operand.vmem [shape: f32[4,1], index: 1, kind: input, shape index: {}]
  %s2 = inlined_call_operand.vmem [shape: bf16[36,512], index: 2, kind: input, shape index: {}]
  %s3 = inlined_call_operand.vmem [shape: f32[4,512], index: 3, kind: output, shape index: {}]
  %s4 = sld [smem:[#allocation0]]
  $region22: #{mrfb_forward.40} parent=0
    _
  %s6 = ssub.s32 1, %s4
  %s7 = scalar_select 0, %s6, %s4
  // Predicated region
  $region2: #{mrfb_forward.40} parent=0 // pred_check
    _
  $region3: #{mrfb_forward.40} parent=0 // pred_check_branch
    %9 = sbr.rel (0) target = $region5
  $region4: #{mrfb_forward.40} parent=0 // pred_region
    _
  $region5: #{mrfb_forward.40} parent=0 // pred_fallthru
    _
  // Predicated region
  $region6: #{mrfb_forward.40} parent=0 // pred_check
    _
  $region7: #{mrfb_forward.40} parent=0 // pred_check_branch
    %11 = sbr.rel (0) target = $region9
  $region8: #{mrfb_forward.40} parent=0 // pred_region
    _
  $region9: #{mrfb_forward.40} parent=0 // pred_fallthru
    _
  // Predicated region
  $region10: #{mrfb_forward.40} parent=0 // pred_check
    _
  $region11: #{mrfb_forward.40} parent=0 // pred_check_branch
    %13 = sbr.rel (0) target = $region13
  $region12: #{mrfb_forward.40} parent=0 // pred_region
    _
  $region13: #{mrfb_forward.40} parent=0 // pred_fallthru
    _
  %v15 = vld [vmem:[%s0] sm:$0x3]
  %v16 = vld [vmem:[%s2] sm:$0xff]
  %v17 = vld [vmem:[%s2 + $0x8] sm:$0xff]
  %v18 = vld [vmem:[%s2 + $0x10] sm:$0xff]
  %v19 = vld [vmem:[%s2 + $0x18] sm:$0xff]
  %v20 = vld [vmem:[%s2 + $0x20] sm:$0xff]
  %v21 = vld [vmem:[%s2 + $0x28] sm:$0xff]
  %v22 = vld [vmem:[%s2 + $0x30] sm:$0xff]
  %v23 = vld [vmem:[%s2 + $0x38] sm:$0xff]
  %v24 = vld [vmem:[%s2 + $0x40] sm:$0x33]
  %v25 = vld [vmem:[%s2 + $0x48] sm:$0x33]
  %v26 = vld [vmem:[%s1] sm:$0xf]
  %28 = vset.pattern.permute.xlu0 0
  %29 = vperm.xlu0 %28, %v26
  %v30 = vpop.permute.xlu0 %29
  %v42 = vunpack.c.l.b16 %v16
  %v43 = vunpack.c.h.b16 %v16
  %v44 = vunpack.c.l.b16 %v17
  %v45 = vunpack.c.h.b16 %v17
  %v46 = vunpack.c.l.b16 %v18
  %v47 = vunpack.c.h.b16 %v18
  %v48 = vunpack.c.l.b16 %v19
  %v49 = vunpack.c.h.b16 %v19
  %v50 = vunpack.c.l.b16 %v20
  %v51 = vunpack.c.h.b16 %v20
  %v52 = vunpack.c.l.b16 %v21
  %v53 = vunpack.c.h.b16 %v21
  %v54 = vunpack.c.l.b16 %v22
  %v55 = vunpack.c.h.b16 %v22
  %v56 = vunpack.c.l.b16 %v23
  %v57 = vunpack.c.h.b16 %v23
  %v58 = vunpack.c.l.b16 %v24
  %v59 = vunpack.c.h.b16 %v24
  %v60 = vunpack.c.l.b16 %v25
  %v61 = vunpack.c.h.b16 %v25
  %v62 = vpack.c.b16 %v46, %v42
  %v63 = vpack.c.b16 %v47, %v43
  %v64 = vpack.c.b16 %v48, %v44
  %v65 = vpack.c.b16 %v49, %v45
  %v66 = vpack.c.b16 %v54, %v50
  %v67 = vpack.c.b16 %v55, %v51
  %v68 = vpack.c.b16 %v56, %v52
  %v69 = vpack.c.b16 %v57, %v53
  %v70 = vpack.c.b16 %v58, %v58
  %v71 = vpack.c.b16 %v59, %v59
  %v72 = vpack.c.b16 %v60, %v60
  %v73 = vpack.c.b16 %v61, %v61
  %vm82 = vcmask 293888
  %v84 = vsel %vm82, %v15, 0
  %vm86 = vcmask 1041408
  %v88 = vsel %vm86, %v70, 0
  %v91 = vsel %vm86, %v71, 0
  %v94 = vsel %vm86, %v72, 0
  %v97 = vsel %vm86, %v73, 0
  %99 = vmatprep.subr.bf16.mxu0 %v63
  %100 = vmatpush1.bf16.msra.mxu0 %v62
  %101 = vmatprep.subr.bf16.mxu0 %v67
  %102 = vmatpush1.bf16.msra.mxu0 %v66
  %103 = vmatprep.subr.bf16.mxu0 %v91
  %104 = vmatpush1.bf16.msra.mxu0 %v88
  %105 = vmatprep.subr.bf16.mxu0 0
  %106 = vmatpush1.bf16.msra.mxu0 0
  %107 = vmatprep.subr.bf16.mxu0 0
  %108 = vmatpush1.bf16.msra.mxu0 0
  %109 = vmatprep.subr.bf16.mxu0 0
  %110 = vmatpush1.bf16.msra.mxu0 0
  %111 = vmatprep.subr.bf16.mxu0 0
  %112 = vmatpush1.bf16.msra.mxu0 0
  %113 = vmatprep.subr.bf16.mxu0 0
  %114 = vmatpush1.bf16.msra.mxu0 0
  %115 = vmatprep.subr.bf16.mxu0 0
  %116 = vmatpush1.bf16.msra.mxu0 0
  %117 = vmatprep.subr.bf16.mxu0 0
  %118 = vmatpush1.bf16.msra.mxu0 0
  %119 = vmatprep.subr.bf16.mxu0 0
  %120 = vmatpush1.bf16.msra.mxu0 0
  %121 = vmatprep.subr.bf16.mxu0 0
  %122 = vmatpush1.bf16.msra.mxu0 0
  %123 = vmatprep.subr.bf16.mxu0 0
  %124 = vmatpush1.bf16.msra.mxu0 0
  %125 = vmatprep.subr.bf16.mxu0 0
  %126 = vmatpush1.bf16.msra.mxu0 0
  %127 = vmatprep.subr.bf16.mxu0 0
  %128 = vmatpush1.bf16.msra.mxu0 0
  %129 = vmatprep.subr.bf16.mxu0 0
  %130 = vmatpush1.bf16.msra.mxu0 0
  %131 = vmatprep.mubr.bf16.mxu0 0
  %132 = vmatmul.mubr.bf16.gmra.mrb[0].mxu0 %v84
  %v133 = vpop.f32.mrb[0].mxu0
  %v134 = vadd.f32 %v30, %v133
  %v135 = vpop.f32.mrb[0].mxu0
  %v136 = vadd.f32 %v30, %v135
  %v137 = vpop.f32.mrb[0].mxu0
  %v138 = vpop.f32.mrb[0].mxu0
  %139 = vdwg.mxu0
  %140 = vmatprep.subr.bf16.mxu0 %v65
  %141 = vmatpush1.bf16.msra.mxu0 %v64
  %142 = vmatprep.subr.bf16.mxu0 %v69
  %143 = vmatpush1.bf16.msra.mxu0 %v68
  %144 = vmatprep.subr.bf16.mxu0 %v97
  %145 = vmatpush1.bf16.msra.mxu0 %v94
  %146 = vmatprep.subr.bf16.mxu0 0
  %147 = vmatpush1.bf16.msra.mxu0 0
  %148 = vmatprep.subr.bf16.mxu0 0
  %149 = vmatpush1.bf16.msra.mxu0 0
  %150 = vmatprep.subr.bf16.mxu0 0
  %151 = vmatpush1.bf16.msra.mxu0 0
  %152 = vmatprep.subr.bf16.mxu0 0
  %153 = vmatpush1.bf16.msra.mxu0 0
  %154 = vmatprep.subr.bf16.mxu0 0
  %155 = vmatpush1.bf16.msra.mxu0 0
  %156 = vmatprep.subr.bf16.mxu0 0
  %157 = vmatpush1.bf16.msra.mxu0 0
  %158 = vmatprep.subr.bf16.mxu0 0
  %159 = vmatpush1.bf16.msra.mxu0 0
  %160 = vmatprep.subr.bf16.mxu0 0
  %161 = vmatpush1.bf16.msra.mxu0 0
  %162 = vmatprep.subr.bf16.mxu0 0
  %163 = vmatpush1.bf16.msra.mxu0 0
  %164 = vmatprep.subr.bf16.mxu0 0
  %165 = vmatpush1.bf16.msra.mxu0 0
  %166 = vmatprep.subr.bf16.mxu0 0
  %167 = vmatpush1.bf16.msra.mxu0 0
  %168 = vmatprep.subr.bf16.mxu0 0
  %169 = vmatpush1.bf16.msra.mxu0 0
  %170 = vmatprep.subr.bf16.mxu0 0
  %171 = vmatpush1.bf16.msra.mxu0 0
  %172 = vmatprep.mubr.bf16.mxu0 0
  %173 = vmatmul.mubr.bf16.gmra.mrb[0].mxu0 %v84
  %v174 = vpop.f32.mrb[0].mxu0
  %v175 = vadd.f32 %v30, %v174
  %v176 = vpop.f32.mrb[0].mxu0
  %v177 = vadd.f32 %v30, %v176
  %v178 = vpop.f32.mrb[0].mxu0
  %v179 = vpop.f32.mrb[0].mxu0
  %180 = vdwg.mxu0
  %v181 = vmax.f32 %v134, 0.0
  %v182 = vmax.f32 %v136, 0.0
  %v183 = vmax.f32 %v175, 0.0
  %v184 = vmax.f32 %v177, 0.0
  %v189 = vcombine.low %v181, %v182
  %v190 = vcombine.low %v183, %v184
  %193 = vst [vmem:[%s3] sm:$0xff] %v189
  %194 = vst [vmem:[%s3 + $0x8] sm:$0xff] %v190
  // Predicated region
  $region14: #{mrfb_forward.40} parent=0 // pred_check
    _
  $region15: #{mrfb_forward.40} parent=0 // pred_check_branch
    %196 = sbr.rel (0) target = $region17
  $region16: #{mrfb_forward.40} parent=0 // pred_region
    _
  $region17: #{mrfb_forward.40} parent=0 // pred_fallthru
    _
  // Predicated region
  $region18: #{mrfb_forward.40} parent=0 // pred_check
    _
  $region19: #{mrfb_forward.40} parent=0 // pred_check_branch
    %198 = sbr.rel (0) target = $region21
  $region20: #{mrfb_forward.40} parent=0 // pred_region
    _
  $region21: #{mrfb_forward.40} parent=0 // pred_fallthru
    _

// kernel: mrfb_forward.45
$region0: #{mrfb_forward.45}
  #allocation0 [shape = 'u32[]', space=smem, size = 0x4, offset = 0x4, fixed_abs, tag = 'smem constant byte address 0x4 - core index']
  #allocation1 [shape = 'u32[144,128]{1,0:T(1,128)}', space=vmem, size = 0x12000, scoped, tag = 'internal scratch']
  #allocation2 [shape = 'f32[1,1]{1,0:T(1,128)S(1)}', space=vmem, size = 0x200, scoped, tag = 'scoped memory for mrfb_forward.45']
  %s0 = inlined_call_operand.vmem [shape: bf16[4,36], index: 0, kind: input, shape index: {}]
  %s1 = inlined_call_operand.vmem [shape: f32[4,1], index: 1, kind: input, shape index: {}]
  %s2 = inlined_call_operand.vmem [shape: f32[1,4], index: 2, kind: input, shape index: {}]
  %s3 = inlined_call_operand.<no memory space> [shape: f32[1,1], index: 3, kind: input, shape index: {}]
  %s4 = inlined_call_operand.vmem [shape: bf16[36,512], index: 4, kind: input, shape index: {}]
  %s5 = inlined_call_operand.vmem [shape: f32[4,512], index: 5, kind: input, shape index: {}]
  %s6 = inlined_call_operand.vmem [shape: f32[4,512], index: 6, kind: output, shape index: {}]
  %s7 = sld [smem:[#allocation0]]
  $region34: #{mrfb_forward.45} parent=0
    _
  %s9 = ssub.s32 1, %s7
  %s10 = scalar_select 0, %s9, %s7
  %v11 = vstv %s3
  %12 = vst [vmem:[#allocation2] sm:$0x1] %v11
  // Predicated region
  $region2: #{mrfb_forward.45} parent=0 // pred_check
    _
  $region3: #{mrfb_forward.45} parent=0 // pred_check_branch
    %14 = sbr.rel (0) target = $region5
  $region4: #{mrfb_forward.45} parent=0 // pred_region
    _
  $region5: #{mrfb_forward.45} parent=0 // pred_fallthru
    _
  // Predicated region
  $region6: #{mrfb_forward.45} parent=0 // pred_check
    _
  $region7: #{mrfb_forward.45} parent=0 // pred_check_branch
    %16 = sbr.rel (0) target = $region9
  $region8: #{mrfb_forward.45} parent=0 // pred_region
    _
  $region9: #{mrfb_forward.45} parent=0 // pred_fallthru
    _
  // Predicated region
  $region10: #{mrfb_forward.45} parent=0 // pred_check
    _
  $region11: #{mrfb_forward.45} parent=0 // pred_check_branch
    %18 = sbr.rel (0) target = $region13
  $region12: #{mrfb_forward.45} parent=0 // pred_region
    _
  $region13: #{mrfb_forward.45} parent=0 // pred_fallthru
    _
  // Predicated region
  $region14: #{mrfb_forward.45} parent=0 // pred_check
    _
  $region15: #{mrfb_forward.45} parent=0 // pred_check_branch
    %20 = sbr.rel (0) target = $region17
  $region16: #{mrfb_forward.45} parent=0 // pred_region
    _
  $region17: #{mrfb_forward.45} parent=0 // pred_fallthru
    _
  // Predicated region
  $region18: #{mrfb_forward.45} parent=0 // pred_check
    _
  $region19: #{mrfb_forward.45} parent=0 // pred_check_branch
    %22 = sbr.rel (0) target = $region21
  $region20: #{mrfb_forward.45} parent=0 // pred_region
    _
  $region21: #{mrfb_forward.45} parent=0 // pred_fallthru
    _
  // Predicated region
  $region22: #{mrfb_forward.45} parent=0 // pred_check
    _
  $region23: #{mrfb_forward.45} parent=0 // pred_check_branch
    %24 = sbr.rel (0) target = $region25
  $region24: #{mrfb_forward.45} parent=0 // pred_region
    _
  $region25: #{mrfb_forward.45} parent=0 // pred_fallthru
    _
  %v26 = vld [vmem:[%s0] sm:$0x3]
  %v27 = vld [vmem:[%s4] sm:$0xff]
  %v28 = vld [vmem:[%s4 + $0x8] sm:$0xff]
  %v29 = vld [vmem:[%s4 + $0x10] sm:$0xff]
  %v30 = vld [vmem:[%s4 + $0x18] sm:$0xff]
  %v31 = vld [vmem:[%s4 + $0x20] sm:$0xff]
  %v32 = vld [vmem:[%s4 + $0x28] sm:$0xff]
  %v33 = vld [vmem:[%s4 + $0x30] sm:$0xff]
  %v34 = vld [vmem:[%s4 + $0x38] sm:$0xff]
  %v35 = vld [vmem:[%s4 + $0x40] sm:$0x33]
  %v36 = vld [vmem:[%s4 + $0x48] sm:$0x33]
  %v37 = vld [vmem:[%s1] sm:$0xf]
  %39 = vset.pattern.permute.xlu0 0
  %40 = vperm.xlu0 %39, %v37
  %v41 = vpop.permute.xlu0 %40
  %v53 = vunpack.c.l.b16 %v27
  %v54 = vunpack.c.h.b16 %v27
  %v55 = vunpack.c.l.b16 %v28
  %v56 = vunpack.c.h.b16 %v28
  %v57 = vunpack.c.l.b16 %v29
  %v58 = vunpack.c.h.b16 %v29
  %v59 = vunpack.c.l.b16 %v30
  %v60 = vunpack.c.h.b16 %v30
  %v61 = vunpack.c.l.b16 %v31
  %v62 = vunpack.c.h.b16 %v31
  %v63 = vunpack.c.l.b16 %v32
  %v64 = vunpack.c.h.b16 %v32
  %v65 = vunpack.c.l.b16 %v33
  %v66 = vunpack.c.h.b16 %v33
  %v67 = vunpack.c.l.b16 %v34
  %v68 = vunpack.c.h.b16 %v34
  %v69 = vunpack.c.l.b16 %v35
  %v70 = vunpack.c.h.b16 %v35
  %v71 = vunpack.c.l.b16 %v36
  %v72 = vunpack.c.h.b16 %v36
  %v73 = vpack.c.b16 %v57, %v53
  %v74 = vpack.c.b16 %v58, %v54
  %v75 = vpack.c.b16 %v59, %v55
  %v76 = vpack.c.b16 %v60, %v56
  %v77 = vpack.c.b16 %v65, %v61
  %v78 = vpack.c.b16 %v66, %v62
  %v79 = vpack.c.b16 %v67, %v63
  %v80 = vpack.c.b16 %v68, %v64
  %v81 = vpack.c.b16 %v69, %v69
  %v82 = vpack.c.b16 %v70, %v70
  %v83 = vpack.c.b16 %v71, %v71
  %v84 = vpack.c.b16 %v72, %v72
  %vm93 = vcmask 293888
  %v95 = vsel %vm93, %v26, 0
  %vm97 = vcmask 1041408
  %v99 = vsel %vm97, %v81, 0
  %v102 = vsel %vm97, %v82, 0
  %v105 = vsel %vm97, %v83, 0
  %v108 = vsel %vm97, %v84, 0
  %110 = vmatprep.subr.bf16.mxu0 %v74
  %111 = vmatpush1.bf16.msra.mxu0 %v73
  %112 = vmatprep.subr.bf16.mxu0 %v78
  %113 = vmatpush1.bf16.msra.mxu0 %v77
  %114 = vmatprep.subr.bf16.mxu0 %v102
  %115 = vmatpush1.bf16.msra.mxu0 %v99
  %116 = vmatprep.subr.bf16.mxu0 0
  %117 = vmatpush1.bf16.msra.mxu0 0
  %118 = vmatprep.subr.bf16.mxu0 0
  %119 = vmatpush1.bf16.msra.mxu0 0
  %120 = vmatprep.subr.bf16.mxu0 0
  %121 = vmatpush1.bf16.msra.mxu0 0
  %122 = vmatprep.subr.bf16.mxu0 0
  %123 = vmatpush1.bf16.msra.mxu0 0
  %124 = vmatprep.subr.bf16.mxu0 0
  %125 = vmatpush1.bf16.msra.mxu0 0
  %126 = vmatprep.subr.bf16.mxu0 0
  %127 = vmatpush1.bf16.msra.mxu0 0
  %128 = vmatprep.subr.bf16.mxu0 0
  %129 = vmatpush1.bf16.msra.mxu0 0
  %130 = vmatprep.subr.bf16.mxu0 0
  %131 = vmatpush1.bf16.msra.mxu0 0
  %132 = vmatprep.subr.bf16.mxu0 0
  %133 = vmatpush1.bf16.msra.mxu0 0
  %134 = vmatprep.subr.bf16.mxu0 0
  %135 = vmatpush1.bf16.msra.mxu0 0
  %136 = vmatprep.subr.bf16.mxu0 0
  %137 = vmatpush1.bf16.msra.mxu0 0
  %138 = vmatprep.subr.bf16.mxu0 0
  %139 = vmatpush1.bf16.msra.mxu0 0
  %140 = vmatprep.subr.bf16.mxu0 0
  %141 = vmatpush1.bf16.msra.mxu0 0
  %142 = vmatprep.mubr.bf16.mxu0 0
  %143 = vmatmul.mubr.bf16.gmra.mrb[0].mxu0 %v95
  %v144 = vpop.f32.mrb[0].mxu0
  %v145 = vadd.f32 %v41, %v144
  %v146 = vpop.f32.mrb[0].mxu0
  %v147 = vadd.f32 %v41, %v146
  %v148 = vpop.f32.mrb[0].mxu0
  %v149 = vpop.f32.mrb[0].mxu0
  %150 = vdwg.mxu0
  %151 = vmatprep.subr.bf16.mxu0 %v76
  %152 = vmatpush1.bf16.msra.mxu0 %v75
  %153 = vmatprep.subr.bf16.mxu0 %v80
  %154 = vmatpush1.bf16.msra.mxu0 %v79
  %155 = vmatprep.subr.bf16.mxu0 %v108
  %156 = vmatpush1.bf16.msra.mxu0 %v105
  %157 = vmatprep.subr.bf16.mxu0 0
  %158 = vmatpush1.bf16.msra.mxu0 0
  %159 = vmatprep.subr.bf16.mxu0 0
  %160 = vmatpush1.bf16.msra.mxu0 0
  %161 = vmatprep.subr.bf16.mxu0 0
  %162 = vmatpush1.bf16.msra.mxu0 0
  %163 = vmatprep.subr.bf16.mxu0 0
  %164 = vmatpush1.bf16.msra.mxu0 0
  %165 = vmatprep.subr.bf16.mxu0 0
  %166 = vmatpush1.bf16.msra.mxu0 0
  %167 = vmatprep.subr.bf16.mxu0 0
  %168 = vmatpush1.bf16.msra.mxu0 0
  %169 = vmatprep.subr.bf16.mxu0 0
  %170 = vmatpush1.bf16.msra.mxu0 0
  %171 = vmatprep.subr.bf16.mxu0 0
  %172 = vmatpush1.bf16.msra.mxu0 0
  %173 = vmatprep.subr.bf16.mxu0 0
  %174 = vmatpush1.bf16.msra.mxu0 0
  %175 = vmatprep.subr.bf16.mxu0 0
  %176 = vmatpush1.bf16.msra.mxu0 0
  %177 = vmatprep.subr.bf16.mxu0 0
  %178 = vmatpush1.bf16.msra.mxu0 0
  %179 = vmatprep.subr.bf16.mxu0 0
  %180 = vmatpush1.bf16.msra.mxu0 0
  %181 = vmatprep.subr.bf16.mxu0 0
  %182 = vmatpush1.bf16.msra.mxu0 0
  %183 = vmatprep.mubr.bf16.mxu0 0
  %184 = vmatmul.mubr.bf16.gmra.mrb[0].mxu0 %v95
  %v185 = vpop.f32.mrb[0].mxu0
  %v186 = vadd.f32 %v41, %v185
  %v187 = vpop.f32.mrb[0].mxu0
  %v188 = vadd.f32 %v41, %v187
  %v189 = vpop.f32.mrb[0].mxu0
  %v190 = vpop.f32.mrb[0].mxu0
  %191 = vdwg.mxu0
  %v192 = vmax.f32 %v145, 0.0
  %v193 = vmax.f32 %v147, 0.0
  %v194 = vmax.f32 %v186, 0.0
  %v195 = vmax.f32 %v188, 0.0
  %v196 = vld [vmem:[%s2] sm:$0x1]
  %v197 = vld [vmem:[#allocation2] sm:$0x1]
  %199 = vset.pattern.permute.xlu0 0
  %200 = vperm.xlu0 %199, %v197
  %v201 = vpop.permute.xlu0 %200
  %v203 = vlaneseq
  %v204 = vshrl.u32 %v203, 7
  %v205 = vsub.s32 0, %v204
  %v206 = vrot.slane %v201, %v205
  %vm207 = vcmask 31744
  %v209 = vsel %vm207, %v196, 0
  %vm211 = vcmask 1043456
  %v213 = vsel %vm211, %v192, 0
  %v216 = vsel %vm211, %v193, 0
  %v219 = vsel %vm211, %v194, 0
  %v222 = vsel %vm211, %v195, 0
  %224 = vmatprep.subr.mxu0 %v216
  %225 = vmatpush1.msra.mxu0 %v213
  %226 = vmatprep.subr.mxu0 0.0
  %227 = vmatpush1.msra.mxu0 0.0
  %228 = vmatprep.subr.mxu0 0.0
  %229 = vmatpush1.msra.mxu0 0.0
  %230 = vmatprep.subr.mxu0 0.0
  %231 = vmatpush1.msra.mxu0 0.0
  %232 = vmatprep.subr.mxu0 0.0
  %233 = vmatpush1.msra.mxu0 0.0
  %234 = vmatprep.subr.mxu0 0.0
  %235 = vmatpush1.msra.mxu0 0.0
  %236 = vmatprep.subr.mxu0 0.0
  %237 = vmatpush1.msra.mxu0 0.0
  %238 = vmatprep.subr.mxu0 0.0
  %239 = vmatpush1.msra.mxu0 0.0
  %240 = vmatprep.subr.mxu0 0.0
  %241 = vmatpush1.msra.mxu0 0.0
  %242 = vmatprep.subr.mxu0 0.0
  %243 = vmatpush1.msra.mxu0 0.0
  %244 = vmatprep.subr.mxu0 0.0
  %245 = vmatpush1.msra.mxu0 0.0
  %246 = vmatprep.subr.mxu0 0.0
  %247 = vmatpush1.msra.mxu0 0.0
  %248 = vmatprep.subr.mxu0 0.0
  %249 = vmatpush1.msra.mxu0 0.0
  %250 = vmatprep.subr.mxu0 0.0
  %251 = vmatpush1.msra.mxu0 0.0
  %252 = vmatprep.subr.mxu0 0.0
  %253 = vmatpush1.msra.mxu0 0.0
  %254 = vmatprep.subr.mxu0 0.0
  %255 = vmatpush1.msra.mxu0 0.0
  %256 = vmatprep.subr.mxu0 0.0
  %257 = vmatpush1.msra.mxu0 0.0
  %258 = vmatprep.subr.mxu0 0.0
  %259 = vmatpush1.msra.mxu0 0.0
  %260 = vmatprep.subr.mxu0 0.0
  %261 = vmatpush1.msra.mxu0 0.0
  %262 = vmatprep.subr.mxu0 0.0
  %263 = vmatpush1.msra.mxu0 0.0
  %264 = vmatprep.subr.mxu0 0.0
  %265 = vmatpush1.msra.mxu0 0.0
  %266 = vmatprep.subr.mxu0 0.0
  %267 = vmatpush1.msra.mxu0 0.0
  %268 = vmatprep.subr.mxu0 0.0
  %269 = vmatpush1.msra.mxu0 0.0
  %270 = vmatprep.subr.mxu0 0.0
  %271 = vmatpush1.msra.mxu0 0.0
  %272 = vmatprep.subr.mxu0 0.0
  %273 = vmatpush1.msra.mxu0 0.0
  %274 = vmatprep.subr.mxu0 0.0
  %275 = vmatpush1.msra.mxu0 0.0
  %276 = vmatprep.subr.mxu0 0.0
  %277 = vmatpush1.msra.mxu0 0.0
  %278 = vmatprep.subr.mxu0 0.0
  %279 = vmatpush1.msra.mxu0 0.0
  %280 = vmatprep.subr.mxu0 0.0
  %281 = vmatpush1.msra.mxu0 0.0
  %282 = vmatprep.subr.mxu0 0.0
  %283 = vmatpush1.msra.mxu0 0.0
  %284 = vmatprep.subr.mxu0 0.0
  %285 = vmatpush1.msra.mxu0 0.0
  %286 = vmatprep.subr.mxu0 0.0
  %287 = vmatpush1.msra.mxu0 0.0
  %288 = vmatprep.mubr.f32.mxu0 0.0
  %289 = vmatmul.mubr.f32.gmra.mrb[0].mxu0 %v209
  %v290 = vpop.f32.mrb[0].mxu0
  %v291 = vadd.f32 %v206, %v290
  %v292 = vpop.f32.mrb[0].mxu0
  %v293 = vadd.f32 %v206, %v292
  %294 = vdwg.mxu0
  %295 = vmatprep.subr.mxu0 %v222
  %296 = vmatpush1.msra.mxu0 %v219
  %297 = vmatprep.subr.mxu0 0.0
  %298 = vmatpush1.msra.mxu0 0.0
  %299 = vmatprep.subr.mxu0 0.0
  %300 = vmatpush1.msra.mxu0 0.0
  %301 = vmatprep.subr.mxu0 0.0
  %302 = vmatpush1.msra.mxu0 0.0
  %303 = vmatprep.subr.mxu0 0.0
  %304 = vmatpush1.msra.mxu0 0.0
  %305 = vmatprep.subr.mxu0 0.0
  %306 = vmatpush1.msra.mxu0 0.0
  %307 = vmatprep.subr.mxu0 0.0
  %308 = vmatpush1.msra.mxu0 0.0
  %309 = vmatprep.subr.mxu0 0.0
  %310 = vmatpush1.msra.mxu0 0.0
  %311 = vmatprep.subr.mxu0 0.0
  %312 = vmatpush1.msra.mxu0 0.0
  %313 = vmatprep.subr.mxu0 0.0
  %314 = vmatpush1.msra.mxu0 0.0
  %315 = vmatprep.subr.mxu0 0.0
  %316 = vmatpush1.msra.mxu0 0.0
  %317 = vmatprep.subr.mxu0 0.0
  %318 = vmatpush1.msra.mxu0 0.0
  %319 = vmatprep.subr.mxu0 0.0
  %320 = vmatpush1.msra.mxu0 0.0
  %321 = vmatprep.subr.mxu0 0.0
  %322 = vmatpush1.msra.mxu0 0.0
  %323 = vmatprep.subr.mxu0 0.0
  %324 = vmatpush1.msra.mxu0 0.0
  %325 = vmatprep.subr.mxu0 0.0
  %326 = vmatpush1.msra.mxu0 0.0
  %327 = vmatprep.subr.mxu0 0.0
  %328 = vmatpush1.msra.mxu0 0.0
  %329 = vmatprep.subr.mxu0 0.0
  %330 = vmatpush1.msra.mxu0 0.0
  %331 = vmatprep.subr.mxu0 0.0
  %332 = vmatpush1.msra.mxu0 0.0
  %333 = vmatprep.subr.mxu0 0.0
  %334 = vmatpush1.msra.mxu0 0.0
  %335 = vmatprep.subr.mxu0 0.0
  %336 = vmatpush1.msra.mxu0 0.0
  %337 = vmatprep.subr.mxu0 0.0
  %338 = vmatpush1.msra.mxu0 0.0
  %339 = vmatprep.subr.mxu0 0.0
  %340 = vmatpush1.msra.mxu0 0.0
  %341 = vmatprep.subr.mxu0 0.0
  %342 = vmatpush1.msra.mxu0 0.0
  %343 = vmatprep.subr.mxu0 0.0
  %344 = vmatpush1.msra.mxu0 0.0
  %345 = vmatprep.subr.mxu0 0.0
  %346 = vmatpush1.msra.mxu0 0.0
  %347 = vmatprep.subr.mxu0 0.0
  %348 = vmatpush1.msra.mxu0 0.0
  %349 = vmatprep.subr.mxu0 0.0
  %350 = vmatpush1.msra.mxu0 0.0
  %351 = vmatprep.subr.mxu0 0.0
  %352 = vmatpush1.msra.mxu0 0.0
  %353 = vmatprep.subr.mxu0 0.0
  %354 = vmatpush1.msra.mxu0 0.0
  %355 = vmatprep.subr.mxu0 0.0
  %356 = vmatpush1.msra.mxu0 0.0
  %357 = vmatprep.subr.mxu0 0.0
  %358 = vmatpush1.msra.mxu0 0.0
  %359 = vmatprep.mubr.f32.mxu0 0.0
  %360 = vmatmul.mubr.f32.gmra.mrb[0].mxu0 %v209
  %v361 = vpop.f32.mrb[0].mxu0
  %v362 = vadd.f32 %v206, %v361
  %v363 = vpop.f32.mrb[0].mxu0
  %v364 = vadd.f32 %v206, %v363
  %365 = vdwg.mxu0
  %v366 = vld [vmem:[%s5] sm:$0xff]
  %v367 = vld [vmem:[%s5 + $0x8] sm:$0xff]
  %v368 = vlaneseq
  %v369 = vshrl.u32 %v368, 7
  %v370 = vsub.s32 0, %v369
  %v371 = vrot.slane %v291, %v370
  %v372 = vlaneseq
  %v373 = vshrl.u32 %v372, 7
  %v374 = vsub.s32 0, %v373
  %v375 = vrot.slane %v293, %v374
  %v376 = vlaneseq
  %v377 = vshrl.u32 %v376, 7
  %v378 = vsub.s32 0, %v377
  %v379 = vrot.slane %v362, %v378
  %v380 = vlaneseq
  %v381 = vshrl.u32 %v380, 7
  %v382 = vsub.s32 0, %v381
  %v383 = vrot.slane %v364, %v382
  %v388 = vcombine.low %v371, %v375
  %v389 = vcombine.low %v379, %v383
  %v392 = vmul.f32 %v366, %v388
  %v393 = vmul.f32 %v367, %v389
  %394 = vst [vmem:[%s6] sm:$0xff] %v392
  %395 = vst [vmem:[%s6 + $0x8] sm:$0xff] %v393
  // Predicated region
  $region26: #{mrfb_forward.45} parent=0 // pred_check
    _
  $region27: #{mrfb_forward.45} parent=0 // pred_check_branch
    %397 = sbr.rel (0) target = $region29
  $region28: #{mrfb_forward.45} parent=0 // pred_region
    _
  $region29: #{mrfb_forward.45} parent=0 // pred_fallthru
    _
  // Predicated region
  $region30: #{mrfb_forward.45} parent=0 // pred_check
    _
  $region31: #{mrfb_forward.45} parent=0 // pred_check_branch
    %399 = sbr.rel (0) target = $region33
  $region32: #{mrfb_forward.45} parent=0 // pred_region
    _
  $region33: #{mrfb_forward.45} parent=0 // pred_fallthru
    _

// kernel: mrfb_forward.46
$region0: #{mrfb_forward.46}
  #allocation0 [shape = 'u32[]', space=smem, size = 0x4, offset = 0x4, fixed_abs, tag = 'smem constant byte address 0x4 - core index']
  #allocation1 [shape = 'u32[144,128]{1,0:T(1,128)}', space=vmem, size = 0x12000, scoped, tag = 'internal scratch']
  %s0 = inlined_call_operand.vmem [shape: bf16[4,36], index: 0, kind: input, shape index: {}]
  %s1 = inlined_call_operand.vmem [shape: f32[4,1], index: 1, kind: input, shape index: {}]
  %s2 = inlined_call_operand.vmem [shape: bf16[36,128], index: 2, kind: input, shape index: {}]
  %s3 = inlined_call_operand.vmem [shape: f32[4,128], index: 3, kind: output, shape index: {}]
  %s4 = sld [smem:[#allocation0]]
  $region22: #{mrfb_forward.46} parent=0
    _
  %s6 = ssub.s32 1, %s4
  %s7 = scalar_select 0, %s6, %s4
  // Predicated region
  $region2: #{mrfb_forward.46} parent=0 // pred_check
    _
  $region3: #{mrfb_forward.46} parent=0 // pred_check_branch
    %9 = sbr.rel (0) target = $region5
  $region4: #{mrfb_forward.46} parent=0 // pred_region
    _
  $region5: #{mrfb_forward.46} parent=0 // pred_fallthru
    _
  // Predicated region
  $region6: #{mrfb_forward.46} parent=0 // pred_check
    _
  $region7: #{mrfb_forward.46} parent=0 // pred_check_branch
    %11 = sbr.rel (0) target = $region9
  $region8: #{mrfb_forward.46} parent=0 // pred_region
    _
  $region9: #{mrfb_forward.46} parent=0 // pred_fallthru
    _
  // Predicated region
  $region10: #{mrfb_forward.46} parent=0 // pred_check
    _
  $region11: #{mrfb_forward.46} parent=0 // pred_check_branch
    %13 = sbr.rel (0) target = $region13
  $region12: #{mrfb_forward.46} parent=0 // pred_region
    _
  $region13: #{mrfb_forward.46} parent=0 // pred_fallthru
    _
  %v15 = vld [vmem:[%s0] sm:$0x3]
  %v16 = vld [vmem:[%s2] sm:$0xf]
  %v17 = vld [vmem:[%s2 + $0x4] sm:$0xf]
  %v18 = vld [vmem:[%s2 + $0x8] sm:$0xf]
  %v19 = vld [vmem:[%s2 + $0xc] sm:$0xf]
  %v20 = vld [vmem:[%s2 + $0x10] sm:$0x3]
  %v21 = vld [vmem:[%s1] sm:$0xf]
  %23 = vset.pattern.permute.xlu0 0
  %24 = vperm.xlu0 %23, %v21
  %v25 = vpop.permute.xlu0 %24
  %v32 = vunpack.c.l.b16 %v16
  %v33 = vunpack.c.l.b16 %v17
  %v34 = vunpack.c.l.b16 %v18
  %v35 = vunpack.c.l.b16 %v19
  %v36 = vunpack.c.l.b16 %v20
  %v37 = vpack.c.b16 %v33, %v32
  %v38 = vpack.c.b16 %v35, %v34
  %v39 = vpack.c.b16 %v36, %v36
  %vm42 = vcmask 293888
  %v44 = vsel %vm42, %v15, 0
  %vm46 = vcmask 1041408
  %v48 = vsel %vm46, %v39, 0
  %50 = vmatprep.subr.bf16.mxu0 0
  %51 = vmatpush1.bf16.msra.mxu0 %v37
  %52 = vmatprep.subr.bf16.mxu0 0
  %53 = vmatpush1.bf16.msra.mxu0 %v38
  %54 = vmatprep.subr.bf16.mxu0 0
  %55 = vmatpush1.bf16.msra.mxu0 %v48
  %56 = vmatprep.subr.bf16.mxu0 0
  %57 = vmatpush1.bf16.msra.mxu0 0
  %58 = vmatprep.subr.bf16.mxu0 0
  %59 = vmatpush1.bf16.msra.mxu0 0
  %60 = vmatprep.subr.bf16.mxu0 0
  %61 = vmatpush1.bf16.msra.mxu0 0
  %62 = vmatprep.subr.bf16.mxu0 0
  %63 = vmatpush1.bf16.msra.mxu0 0
  %64 = vmatprep.subr.bf16.mxu0 0
  %65 = vmatpush1.bf16.msra.mxu0 0
  %66 = vmatprep.subr.bf16.mxu0 0
  %67 = vmatpush1.bf16.msra.mxu0 0
  %68 = vmatprep.subr.bf16.mxu0 0
  %69 = vmatpush1.bf16.msra.mxu0 0
  %70 = vmatprep.subr.bf16.mxu0 0
  %71 = vmatpush1.bf16.msra.mxu0 0
  %72 = vmatprep.subr.bf16.mxu0 0
  %73 = vmatpush1.bf16.msra.mxu0 0
  %74 = vmatprep.subr.bf16.mxu0 0
  %75 = vmatpush1.bf16.msra.mxu0 0
  %76 = vmatprep.subr.bf16.mxu0 0
  %77 = vmatpush1.bf16.msra.mxu0 0
  %78 = vmatprep.subr.bf16.mxu0 0
  %79 = vmatpush1.bf16.msra.mxu0 0
  %80 = vmatprep.subr.bf16.mxu0 0
  %81 = vmatpush1.bf16.msra.mxu0 0
  %82 = vmatprep.mubr.bf16.mxu0 0
  %83 = vmatmul.mubr.bf16.gmra.mrb[0].mxu0 %v44
  %v84 = vpop.f32.mrb[0].mxu0
  %v85 = vadd.f32 %v25, %v84
  %v86 = vpop.f32.mrb[0].mxu0
  %v87 = vpop.f32.mrb[0].mxu0
  %v88 = vpop.f32.mrb[0].mxu0
  %89 = vdwg.mxu0
  %90 = vst [vmem:[%s3] sm:$0xf] %v85
  // Predicated region
  $region14: #{mrfb_forward.46} parent=0 // pred_check
    _
  $region15: #{mrfb_forward.46} parent=0 // pred_check_branch
    %92 = sbr.rel (0) target = $region17
  $region16: #{mrfb_forward.46} parent=0 // pred_region
    _
  $region17: #{mrfb_forward.46} parent=0 // pred_fallthru
    _
  // Predicated region
  $region18: #{mrfb_forward.46} parent=0 // pred_check
    _
  $region19: #{mrfb_forward.46} parent=0 // pred_check_branch
    %94 = sbr.rel (0) target = $region21
  $region20: #{mrfb_forward.46} parent=0 // pred_region
    _
  $region21: #{mrfb_forward.46} parent=0 // pred_fallthru
    _

// kernel: mrfb_forward.62
$region0: #{mrfb_forward.62}
  #allocation0 [shape = 'u32[]', space=smem, size = 0x4, offset = 0x4, fixed_abs, tag = 'smem constant byte address 0x4 - core index']
  #allocation1 [shape = 'u32[144,128]{1,0:T(1,128)}', space=vmem, size = 0x12000, scoped, tag = 'internal scratch']
  %s0 = inlined_call_operand.vmem [shape: bf16[8,72], index: 0, kind: input, shape index: {}]
  %s1 = inlined_call_operand.vmem [shape: f32[8,1], index: 1, kind: input, shape index: {}]
  %s2 = inlined_call_operand.vmem [shape: bf16[72,128], index: 2, kind: input, shape index: {}]
  %s3 = inlined_call_operand.vmem [shape: f32[8,128], index: 3, kind: output, shape index: {}]
  %s4 = sld [smem:[#allocation0]]
  $region22: #{mrfb_forward.62} parent=0
    _
  %s6 = ssub.s32 1, %s4
  %s7 = scalar_select 0, %s6, %s4
  // Predicated region
  $region2: #{mrfb_forward.62} parent=0 // pred_check
    _
  $region3: #{mrfb_forward.62} parent=0 // pred_check_branch
    %9 = sbr.rel (0) target = $region5
  $region4: #{mrfb_forward.62} parent=0 // pred_region
    _
  $region5: #{mrfb_forward.62} parent=0 // pred_fallthru
    _
  // Predicated region
  $region6: #{mrfb_forward.62} parent=0 // pred_check
    _
  $region7: #{mrfb_forward.62} parent=0 // pred_check_branch
    %11 = sbr.rel (0) target = $region9
  $region8: #{mrfb_forward.62} parent=0 // pred_region
    _
  $region9: #{mrfb_forward.62} parent=0 // pred_fallthru
    _
  // Predicated region
  $region10: #{mrfb_forward.62} parent=0 // pred_check
    _
  $region11: #{mrfb_forward.62} parent=0 // pred_check_branch
    %13 = sbr.rel (0) target = $region13
  $region12: #{mrfb_forward.62} parent=0 // pred_region
    _
  $region13: #{mrfb_forward.62} parent=0 // pred_fallthru
    _
  %v15 = vld [vmem:[%s0] sm:$0xf]
  %v16 = vld [vmem:[%s2] sm:$0xf]
  %v17 = vld [vmem:[%s2 + $0x4] sm:$0xf]
  %v18 = vld [vmem:[%s2 + $0x8] sm:$0xf]
  %v19 = vld [vmem:[%s2 + $0xc] sm:$0xf]
  %v20 = vld [vmem:[%s2 + $0x10] sm:$0xf]
  %v21 = vld [vmem:[%s2 + $0x14] sm:$0xf]
  %v22 = vld [vmem:[%s2 + $0x18] sm:$0xf]
  %v23 = vld [vmem:[%s2 + $0x1c] sm:$0xf]
  %v24 = vld [vmem:[%s2 + $0x20] sm:$0xf]
  %v25 = vld [vmem:[%s1] sm:$0xff]
  %27 = vset.pattern.permute.xlu0 0
  %28 = vperm.xlu0 %27, %v25
  %v29 = vpop.permute.xlu0 %28
  %v40 = vunpack.c.l.b16 %v16
  %v41 = vunpack.c.l.b16 %v17
  %v42 = vunpack.c.l.b16 %v18
  %v43 = vunpack.c.l.b16 %v19
  %v44 = vunpack.c.l.b16 %v20
  %v45 = vunpack.c.l.b16 %v21
  %v46 = vunpack.c.l.b16 %v22
  %v47 = vunpack.c.l.b16 %v23
  %v48 = vunpack.c.l.b16 %v24
  %v49 = vpack.c.b16 %v41, %v40
  %v50 = vpack.c.b16 %v43, %v42
  %v51 = vpack.c.b16 %v45, %v44
  %v52 = vpack.c.b16 %v47, %v46
  %v53 = vpack.c.b16 %v48, %v48
  %vm58 = vcmask 588800
  %v60 = vsel %vm58, %v15, 0
  %vm62 = vcmask 1043456
  %v64 = vsel %vm62, %v53, 0
  %66 = vmatprep.subr.bf16.mxu0 0
  %67 = vmatpush1.bf16.msra.mxu0 %v49
  %68 = vmatprep.subr.bf16.mxu0 0
  %69 = vmatpush1.bf16.msra.mxu0 %v50
  %70 = vmatprep.subr.bf16.mxu0 0
  %71 = vmatpush1.bf16.msra.mxu0 %v51
  %72 = vmatprep.subr.bf16.mxu0 0
  %73 = vmatpush1.bf16.msra.mxu0 %v52
  %74 = vmatprep.subr.bf16.mxu0 0
  %75 = vmatpush1.bf16.msra.mxu0 %v64
  %76 = vmatprep.subr.bf16.mxu0 0
  %77 = vmatpush1.bf16.msra.mxu0 0
  %78 = vmatprep.subr.bf16.mxu0 0
  %79 = vmatpush1.bf16.msra.mxu0 0
  %80 = vmatprep.subr.bf16.mxu0 0
  %81 = vmatpush1.bf16.msra.mxu0 0
  %82 = vmatprep.subr.bf16.mxu0 0
  %83 = vmatpush1.bf16.msra.mxu0 0
  %84 = vmatprep.subr.bf16.mxu0 0
  %85 = vmatpush1.bf16.msra.mxu0 0
  %86 = vmatprep.subr.bf16.mxu0 0
  %87 = vmatpush1.bf16.msra.mxu0 0
  %88 = vmatprep.subr.bf16.mxu0 0
  %89 = vmatpush1.bf16.msra.mxu0 0
  %90 = vmatprep.subr.bf16.mxu0 0
  %91 = vmatpush1.bf16.msra.mxu0 0
  %92 = vmatprep.subr.bf16.mxu0 0
  %93 = vmatpush1.bf16.msra.mxu0 0
  %94 = vmatprep.subr.bf16.mxu0 0
  %95 = vmatpush1.bf16.msra.mxu0 0
  %96 = vmatprep.subr.bf16.mxu0 0
  %97 = vmatpush1.bf16.msra.mxu0 0
  %98 = vmatprep.mubr.bf16.mxu0 0
  %99 = vmatmul.mubr.bf16.gmra.mrb[0].mxu0 %v60
  %v100 = vpop.f32.mrb[0].mxu0
  %v101 = vadd.f32 %v29, %v100
  %v102 = vpop.f32.mrb[0].mxu0
  %v103 = vpop.f32.mrb[0].mxu0
  %v104 = vpop.f32.mrb[0].mxu0
  %105 = vdwg.mxu0
  %v106 = vmax.f32 %v101, 0.0
  %107 = vst [vmem:[%s3] sm:$0xff] %v106
  // Predicated region
  $region14: #{mrfb_forward.62} parent=0 // pred_check
    _
  $region15: #{mrfb_forward.62} parent=0 // pred_check_branch
    %109 = sbr.rel (0) target = $region17
  $region16: #{mrfb_forward.62} parent=0 // pred_region
    _
  $region17: #{mrfb_forward.62} parent=0 // pred_fallthru
    _
  // Predicated region
  $region18: #{mrfb_forward.62} parent=0 // pred_check
    _
  $region19: #{mrfb_forward.62} parent=0 // pred_check_branch
    %111 = sbr.rel (0) target = $region21
  $region20: #{mrfb_forward.62} parent=0 // pred_region
    _
  $region21: #{mrfb_forward.62} parent=0 // pred_fallthru
    _

</llo_original>
